<compile_context>
chip_gen: v5e
topology: v5e:2x2
jax: 0.10.0
libtpu: 0.0.40
codegen_flags: <defaults>
</compile_context>

<pallas_src>
import functools

import jax
import jax.numpy as jnp
from jax import lax
from jax.experimental import pallas as pl
from jax.experimental.pallas import tpu as pltpu

VOCAB = ['<BLANK>', 'a', 'b', 'c', 'd', 'e', 'f', 'g', 'h', 'i', 'j', 'k', 'l', 'm',
         'n', 'o', 'p', 'q', 'r', 's', 't', 'u', 'v', 'w', 'x', 'y', 'z', "'", ' ']

# Small, module-consistent sizes (synthetic; the real module uses 80/256/29).
INPUT_DIM = 32            # n_mels
HIDDEN_DIM = 32           # LSTM hidden size (per direction)
OUTPUT_DIM = len(VOCAB)   # 29


def _round_up(n, m):
    return ((n + m - 1) // m) * m


def _full_spec(shape):
    nd = len(shape)
    return pl.BlockSpec(shape, lambda i, _nd=nd: (0,) * _nd)


def _bilstm_fc_kernel(xf_ref, xb_ref, wihf_ref, wihb_ref, whh_ref,
                      bf_ref, bb_ref, wfcf_ref, wfcb_ref, bfc_ref,
                      out_ref, xg_scr, hist_scr, *, T, B, H, HP):
    """Fused bidirectional LSTM + FC + log_softmax over one VMEM-resident slab.

    xf_ref : (T*B, D) bf16 time-major rows.
    xb_ref : (T*B, D) bf16 the same rows, time-reversed (row-block s == time T-1-s).
    whh    : (HP, 4*HP) bf16 recurrence weights in the padded per-gate block layout
             [fwd H | bwd H | zeros] for each of i, f, g, o.
    xg_scr : (T, B, 4*HP) f32 bias-folded input-gate contributions, step-ordered.
    hist   : (T, B, HP) f32; hist[s] lanes [0:H] = fwd hidden @ time s,
             lanes [H:2H] = bwd hidden @ time T-1-s.
    """
    f32 = jnp.float32
    bf16 = jnp.bfloat16

    # ---- (1) Hoisted compact input projections (bf16 operands, f32 accumulation).
    xg_f = jnp.dot(xf_ref[...], wihf_ref[...],
                   preferred_element_type=f32) + bf_ref[...]       # (T*B, 4H) fwd
    xg_b = jnp.dot(xb_ref[...], wihb_ref[...],
                   preferred_element_type=f32) + bb_ref[...]       # (T*B, 4H) bwd (rev)
    xg_f = xg_f.reshape(T, B, 4 * H)
    xg_b = xg_b.reshape(T, B, 4 * H)

    # ---- (2) One-time lane interleave into the padded, vreg-aligned gate layout
    #          [fwd H | bwd H | zero-pad to HP] x {i, f, g, o}.  Outside the loop.
    if HP > 2 * H:
        xg_scr[...] = jnp.zeros(xg_scr.shape, xg_scr.dtype)        # zero pad lanes once
    for k in range(4):
        xg_scr[:, :, k * HP:k * HP + H] = xg_f[:, :, k * H:(k + 1) * H]
        xg_scr[:, :, k * HP + H:k * HP + 2 * H] = xg_b[:, :, k * H:(k + 1) * H]

    # ---- (3) Loop-invariant recurrence weights, hoisted.
    whh = whh_ref[...]                                             # (HP, 4*HP) bf16

    def step(s, carry):
        # Step s advances the forward direction at time s and the backward direction
        # at time T-1-s; both live in one (B, HP) carry (lanes [0:H] fwd, [H:2H] bwd,
        # pad lanes stay exactly zero).
        h, c = carry
        gates = xg_scr[s] + jnp.dot(h.astype(bf16), whh,
                                    preferred_element_type=f32)    # (B, 4*HP)
        i = jax.nn.sigmoid(gates[:, 0 * HP:1 * HP])                # vreg-aligned slices
        f = jax.nn.sigmoid(gates[:, 1 * HP:2 * HP])
        g = jnp.tanh(gates[:, 2 * HP:3 * HP])
        o = jax.nn.sigmoid(gates[:, 3 * HP:4 * HP])
        c_new = f * c + i * g
        h_new = o * jnp.tanh(c_new)
        hist_scr[s] = h_new                                        # ONE full-width store
        return h_new, c_new

    zeros = jnp.zeros((B, HP), f32)
    lax.fori_loop(0, T, step, (zeros, zeros), unroll=min(T, 8))

    # ---- (4) Epilogue: FC (two bf16 matmuls on the padded history) + log_softmax.
    hf = hist_scr[...].reshape(T * B, HP).astype(bf16)
    # Backward hidden for output time t lives in hist[T-1-t]; rebuild the reversed view
    # with static slices (T is small & static here).
    # TODO(synk): for production-length T, keep a per-direction history (or DMA-reverse)
    # instead of this static concat.
    hb = jnp.concatenate([hist_scr[T - 1 - t] for t in range(T)],
                         axis=0).astype(bf16)                      # (T*B, HP)
    logits = (jnp.dot(hf, wfcf_ref[...], preferred_element_type=f32)
              + jnp.dot(hb, wfcb_ref[...], preferred_element_type=f32)
              + bfc_ref[...])                                      # (T*B, VP) lane-dense
    m = jnp.max(logits, axis=-1, keepdims=True)
    lse = m + jnp.log(jnp.sum(jnp.exp(logits - m), axis=-1, keepdims=True))
    out_ref[...] = logits - lse


def init_params(key, input_dim=INPUT_DIM, hidden_dim=HIDDEN_DIM, output_dim=OUTPUT_DIM):
    """Deterministic synthetic parameters (weights stored pre-transposed for x @ W)."""
    ks = jax.random.split(key, 10)
    s_lstm = 1.0 / jnp.sqrt(hidden_dim)
    s_fc = 1.0 / jnp.sqrt(2 * hidden_dim)
    u = lambda k, shp, s: jax.random.uniform(k, shp, jnp.float32, -s, s)
    return {
        # forward direction (gate column blocks in PyTorch order i, f, g, o)
        'wih_f': u(ks[0], (input_dim, 4 * hidden_dim), s_lstm),
        'whh_f': u(ks[1], (hidden_dim, 4 * hidden_dim), s_lstm),
        'b_f':   u(ks[2], (1, 4 * hidden_dim), s_lstm)
               + u(ks[3], (1, 4 * hidden_dim), s_lstm),   # b_ih + b_hh fused
        # backward direction
        'wih_b': u(ks[4], (input_dim, 4 * hidden_dim), s_lstm),
        'whh_b': u(ks[5], (hidden_dim, 4 * hidden_dim), s_lstm),
        'b_b':   u(ks[6], (1, 4 * hidden_dim), s_lstm)
               + u(ks[7], (1, 4 * hidden_dim), s_lstm),
        # fc (rows 0:H act on forward hidden, H:2H on backward hidden)
        'wfc': u(ks[8], (2 * hidden_dim, output_dim), s_fc),
        'bfc': u(ks[9], (1, output_dim), s_fc),
    }


def _pack_params(params, HP, VP):
    """Repack params into the padded, bf16 layouts the kernel expects."""
    H = params['whh_f'].shape[0]
    V = params['bfc'].shape[1]
    bf16 = jnp.bfloat16

    # Compact per-direction input projections (no structurally-zero columns).
    wihf = params['wih_f'].astype(bf16)                              # (D, 4H)
    wihb = params['wih_b'].astype(bf16)                              # (D, 4H)

    # Recurrence weights in padded per-gate block layout [fwd H | bwd H | 0] x 4.
    whh = jnp.zeros((HP, 4 * HP), jnp.float32)
    for k in range(4):
        whh = whh.at[0:H, k * HP:k * HP + H].set(params['whh_f'][:, k * H:(k + 1) * H])
        whh = whh.at[H:2 * H, k * HP + H:k * HP + 2 * H].set(
            params['whh_b'][:, k * H:(k + 1) * H])
    whh = whh.astype(bf16)

    bf = params['b_f'].astype(jnp.float32)                           # (1, 4H)
    bb = params['b_b'].astype(jnp.float32)                           # (1, 4H)

    # FC weights split per history buffer; zero rows kill pad lanes / wrong-direction lanes.
    wfcf = jnp.zeros((HP, VP), jnp.float32).at[0:H, :V].set(params['wfc'][0:H, :]).astype(bf16)
    wfcb = jnp.zeros((HP, VP), jnp.float32).at[H:2 * H, :V].set(params['wfc'][H:2 * H, :]).astype(bf16)
    bfc = jnp.full((1, VP), -1e30, jnp.float32).at[:, :V].set(params['bfc'])
    return wihf, wihb, whh, bf, bb, wfcf, wfcb, bfc


def speech_to_text_forward(x, params):
    """x: (batch, 1, n_mels, time) -> log-probs (batch, time, vocab)."""
    xs = jnp.squeeze(x, axis=1)                          # (B, n_mels, T)
    input_dim = params['wih_f'].shape[0]
    if xs.shape[1] != input_dim:
        raise ValueError(f'Expected input size {input_dim}, got {xs.shape[1]}')

    B, D, T = xs.shape
    H = params['whh_f'].shape[0]
    V = params['bfc'].shape[1]
    BP = _round_up(B, 8)                                 # sublane-full batch
    HP = _round_up(max(2 * H, 128), 128)                 # lane-dense hidden / gate block
    VP = _round_up(max(V, 128), 128)                     # lane-dense padded vocab

    # Single permute to time-major; pad batch; flatten rows; bf16 for the MXU.
    xt = jnp.transpose(xs, (2, 0, 1))                    # (T, B, D)
    if BP != B:
        xt = jnp.pad(xt, ((0, 0), (0, BP - B), (0, 0)))
    x_fwd = xt.reshape(T * BP, D).astype(jnp.bfloat16)
    x_bwd = xt[::-1].reshape(T * BP, D).astype(jnp.bfloat16)   # time-reversed copy

    wihf, wihb, whh, bf, bb, wfcf, wfcb, bfc = _pack_params(params, HP, VP)
    args = (x_fwd, x_bwd, wihf, wihb, whh, bf, bb, wfcf, wfcb, bfc)

    kernel = functools.partial(_bilstm_fc_kernel, T=T, B=BP, H=H, HP=HP)
    out = pl.pallas_call(
        kernel,
        out_shape=jax.ShapeDtypeStruct((T * BP, VP), jnp.float32),
        grid=(1,),
        in_specs=[_full_spec(a.shape) for a in args],
        out_specs=_full_spec((T * BP, VP)),
        scratch_shapes=[pltpu.VMEM((T, BP, 4 * HP), jnp.float32),  # fused input gates
                        pltpu.VMEM((T, BP, HP), jnp.float32)],     # hidden history
        compiler_params=pltpu.CompilerParams(
            dimension_semantics=("arbitrary",),
            vmem_limit_bytes=32 * 1024 * 1024),
    )(*args)

    logp = out.reshape(T, BP, VP)[:, :B, :V]             # drop batch / vocab padding
    return jnp.transpose(logp, (1, 0, 2))                # (B, T, V)


def _reference_forward(x, params):
    """Pure-JAX reference mirroring the PyTorch module, with the same bf16 matmul
    operands / f32 accumulation as the kernel (elementwise math in f32)."""
    bf16 = jnp.bfloat16
    xs = jnp.transpose(jnp.squeeze(x, axis=1), (0, 2, 1)).astype(bf16)   # (B, T, D)
    H = params['whh_f'].shape[0]

    def run_dir(wih, whh, b, seq):
        wih = wih.astype(bf16)
        whh = whh.astype(bf16)

        def step(carry, x_t):
            h, c = carry
            gates = (jnp.dot(x_t, wih, preferred_element_type=jnp.float32)
                     + jnp.dot(h.astype(bf16), whh, preferred_element_type=jnp.float32)
                     + b)
            i = jax.nn.sigmoid(gates[:, 0 * H:1 * H])
            f = jax.nn.sigmoid(gates[:, 1 * H:2 * H])
            g = jnp.tanh(gates[:, 2 * H:3 * H])
            o = jax.nn.sigmoid(gates[:, 3 * H:4 * H])
            c = f * c + i * g
            h = o * jnp.tanh(c)
            return (h, c), h

        Bsz = seq.shape[0]
        init = (jnp.zeros((Bsz, H), jnp.float32), jnp.zeros((Bsz, H), jnp.float32))
        _, hs = lax.scan(step, init, jnp.transpose(seq, (1, 0, 2)))      # (T, B, H)
        return jnp.transpose(hs, (1, 0, 2))                              # (B, T, H)

    hf = run_dir(params['wih_f'], params['whh_f'], params['b_f'], xs)
    hb = run_dir(params['wih_b'], params['whh_b'], params['b_b'], xs[:, ::-1])[:, ::-1]
    hcat = jnp.concatenate([hf, hb], axis=-1).astype(bf16)
    logits = (jnp.dot(hcat, params['wfc'].astype(bf16),
                      preferred_element_type=jnp.float32) + params['bfc'])
    return jax.nn.log_softmax(logits, axis=-1)


if __name__ == "__main__":
    key = jax.random.PRNGKey(0)
    k_x, k_p = jax.random.split(key)

    batch, n_mels, time_steps = 2, INPUT_DIM, 8
    x = jax.random.normal(k_x, (batch, 1, n_mels, time_steps), dtype=jnp.float32)
    params = init_params(k_p)

    fwd = jax.jit(speech_to_text_forward)
    logp = jax.block_until_ready(fwd(x, params))

    # Sanity 1: shape + log_softmax rows exponentiate to probability simplices.
    assert logp.shape == (batch, time_steps, OUTPUT_DIM)
    row_sums = jnp.sum(jnp.exp(logp), axis=-1)
    assert bool(jnp.allclose(row_sums, 1.0, atol=1e-4))

    # Sanity 2: matches the pure-JAX bidirectional-LSTM reference (same bf16 matmuls).
    ref = _reference_forward(x, params)
    max_err = float(jnp.max(jnp.abs(logp - ref)))
    assert bool(jnp.allclose(logp, ref, atol=5e-3, rtol=5e-3)), max_err

    print("KERNEL_OK")
</pallas_src>

<mosaic_0001>
module attributes {stable_mosaic.version = 11 : i64} {
  func.func @_bilstm_fc_kernel(%arg0: i32, %arg1: memref<64x32xbf16, #tpu.memory_space<vmem>>, %arg2: memref<64x32xbf16, #tpu.memory_space<vmem>>, %arg3: memref<32x128xbf16, #tpu.memory_space<vmem>>, %arg4: memref<32x128xbf16, #tpu.memory_space<vmem>>, %arg5: memref<128x512xbf16, #tpu.memory_space<vmem>>, %arg6: memref<1x128xf32, #tpu.memory_space<vmem>>, %arg7: memref<1x128xf32, #tpu.memory_space<vmem>>, %arg8: memref<128x128xbf16, #tpu.memory_space<vmem>>, %arg9: memref<128x128xbf16, #tpu.memory_space<vmem>>, %arg10: memref<1x128xf32, #tpu.memory_space<vmem>>, %arg11: memref<64x128xf32, #tpu.memory_space<vmem>>, %arg12: memref<8x8x512xf32, #tpu.memory_space<vmem>>, %arg13: memref<8x8x128xf32, #tpu.memory_space<vmem>>) attributes {dimension_semantics = [#tpu.dimension_semantics<arbitrary>], iteration_bounds = array<i64: 1>, scalar_prefetch = 0 : i64, scratch_operands = 2 : i64, tpu.core_type = #tpu.core_type<tc>, window_params = [{pipeline_mode = #tpu.pipeline_mode<synchronous>, transform_indices = @transform_0, window_bounds = array<i64: 64, 32>}, {pipeline_mode = #tpu.pipeline_mode<synchronous>, transform_indices = @transform_1, window_bounds = array<i64: 64, 32>}, {pipeline_mode = #tpu.pipeline_mode<synchronous>, transform_indices = @transform_2, window_bounds = array<i64: 32, 128>}, {pipeline_mode = #tpu.pipeline_mode<synchronous>, transform_indices = @transform_3, window_bounds = array<i64: 32, 128>}, {pipeline_mode = #tpu.pipeline_mode<synchronous>, transform_indices = @transform_4, window_bounds = array<i64: 128, 512>}, {pipeline_mode = #tpu.pipeline_mode<synchronous>, transform_indices = @transform_5, window_bounds = array<i64: 1, 128>}, {pipeline_mode = #tpu.pipeline_mode<synchronous>, transform_indices = @transform_6, window_bounds = array<i64: 1, 128>}, {pipeline_mode = #tpu.pipeline_mode<synchronous>, transform_indices = @transform_7, window_bounds = array<i64: 128, 128>}, {pipeline_mode = #tpu.pipeline_mode<synchronous>, transform_indices = @transform_8, window_bounds = array<i64: 128, 128>}, {pipeline_mode = #tpu.pipeline_mode<synchronous>, transform_indices = @transform_9, window_bounds = array<i64: 1, 128>}, {pipeline_mode = #tpu.pipeline_mode<synchronous>, transform_indices = @transform_10, window_bounds = array<i64: 64, 128>}]} {
    %c0 = arith.constant 0 : index
    %c0_0 = arith.constant 0 : index
    %0 = vector.load %arg1[%c0, %c0_0] : memref<64x32xbf16, #tpu.memory_space<vmem>>, vector<64x32xbf16>
    %c0_1 = arith.constant 0 : index
    %c0_2 = arith.constant 0 : index
    %1 = vector.load %arg3[%c0_1, %c0_2] : memref<32x128xbf16, #tpu.memory_space<vmem>>, vector<32x128xbf16>
    %cst = arith.constant dense<0.000000e+00> : vector<64x128xf32>
    %2 = tpu.matmul %0, %1, %cst {dimension_numbers = #tpu.dot_dimension_numbers<[1], [0], [0], [1], [0, 0, 1, 1], [], []>} : vector<64x32xbf16>, vector<32x128xbf16>, vector<64x128xf32> -> vector<64x128xf32>
    %c0_3 = arith.constant 0 : index
    %c0_4 = arith.constant 0 : index
    %3 = vector.load %arg6[%c0_3, %c0_4] : memref<1x128xf32, #tpu.memory_space<vmem>>, vector<1x128xf32>
    %4 = vector.broadcast %3 : vector<1x128xf32> to vector<64x128xf32>
    %5 = arith.addf %2, %4 : vector<64x128xf32>
    %c0_5 = arith.constant 0 : index
    %c0_6 = arith.constant 0 : index
    %6 = vector.load %arg2[%c0_5, %c0_6] : memref<64x32xbf16, #tpu.memory_space<vmem>>, vector<64x32xbf16>
    %c0_7 = arith.constant 0 : index
    %c0_8 = arith.constant 0 : index
    %7 = vector.load %arg4[%c0_7, %c0_8] : memref<32x128xbf16, #tpu.memory_space<vmem>>, vector<32x128xbf16>
    %cst_9 = arith.constant dense<0.000000e+00> : vector<64x128xf32>
    %8 = tpu.matmul %6, %7, %cst_9 {dimension_numbers = #tpu.dot_dimension_numbers<[1], [0], [0], [1], [0, 0, 1, 1], [], []>} : vector<64x32xbf16>, vector<32x128xbf16>, vector<64x128xf32> -> vector<64x128xf32>
    %c0_10 = arith.constant 0 : index
    %c0_11 = arith.constant 0 : index
    %9 = vector.load %arg7[%c0_10, %c0_11] : memref<1x128xf32, #tpu.memory_space<vmem>>, vector<1x128xf32>
    %10 = vector.broadcast %9 : vector<1x128xf32> to vector<64x128xf32>
    %11 = arith.addf %8, %10 : vector<64x128xf32>
    %12 = vector.shape_cast %5 : vector<64x128xf32> to vector<8x8x128xf32>
    %13 = vector.shape_cast %11 : vector<64x128xf32> to vector<8x8x128xf32>
    %cst_12 = arith.constant 0.000000e+00 : f32
    %14 = vector.broadcast %cst_12 : f32 to vector<8x8x512xf32>
    %c0_13 = arith.constant 0 : index
    %c0_14 = arith.constant 0 : index
    %c0_15 = arith.constant 0 : index
    %15 = vector.load %arg12[%c0_13, %c0_14, %c0_15] : memref<8x8x512xf32, #tpu.memory_space<vmem>>, vector<8x8x512xf32>
    tpu.vector_store %arg12[%c0_13, %c0_14, %c0_15], %14 {strides = array<i32>} : memref<8x8x512xf32, #tpu.memory_space<vmem>>, vector<8x8x512xf32>,
    %16 = vector.extract_strided_slice %12 {offsets = [0, 0, 0], sizes = [8, 8, 32], strides = [1, 1, 1]} : vector<8x8x128xf32> to vector<8x8x32xf32>
    %c0_16 = arith.constant 0 : index
    %c0_17 = arith.constant 0 : index
    %c0_18 = arith.constant 0 : index
    %17 = vector.load %arg12[%c0_16, %c0_17, %c0_18] : memref<8x8x512xf32, #tpu.memory_space<vmem>>, vector<8x8x32xf32>
    tpu.vector_store %arg12[%c0_16, %c0_17, %c0_18], %16 {strides = array<i32>} : memref<8x8x512xf32, #tpu.memory_space<vmem>>, vector<8x8x32xf32>,
    %18 = vector.extract_strided_slice %13 {offsets = [0, 0, 0], sizes = [8, 8, 32], strides = [1, 1, 1]} : vector<8x8x128xf32> to vector<8x8x32xf32>
    %c0_19 = arith.constant 0 : index
    %c0_20 = arith.constant 0 : index
    %c32 = arith.constant 32 : index
    %19 = vector.load %arg12[%c0_19, %c0_20, %c32] : memref<8x8x512xf32, #tpu.memory_space<vmem>>, vector<8x8x32xf32>
    tpu.vector_store %arg12[%c0_19, %c0_20, %c32], %18 {strides = array<i32>} : memref<8x8x512xf32, #tpu.memory_space<vmem>>, vector<8x8x32xf32>,
    %20 = vector.extract_strided_slice %12 {offsets = [0, 0, 32], sizes = [8, 8, 32], strides = [1, 1, 1]} : vector<8x8x128xf32> to vector<8x8x32xf32>
    %c0_21 = arith.constant 0 : index
    %c0_22 = arith.constant 0 : index
    %c128 = arith.constant 128 : index
    %21 = vector.load %arg12[%c0_21, %c0_22, %c128] : memref<8x8x512xf32, #tpu.memory_space<vmem>>, vector<8x8x32xf32>
    tpu.vector_store %arg12[%c0_21, %c0_22, %c128], %20 {strides = array<i32>} : memref<8x8x512xf32, #tpu.memory_space<vmem>>, vector<8x8x32xf32>,
    %22 = vector.extract_strided_slice %13 {offsets = [0, 0, 32], sizes = [8, 8, 32], strides = [1, 1, 1]} : vector<8x8x128xf32> to vector<8x8x32xf32>
    %c0_23 = arith.constant 0 : index
    %c0_24 = arith.constant 0 : index
    %c160 = arith.constant 160 : index
    %23 = vector.load %arg12[%c0_23, %c0_24, %c160] : memref<8x8x512xf32, #tpu.memory_space<vmem>>, vector<8x8x32xf32>
    tpu.vector_store %arg12[%c0_23, %c0_24, %c160], %22 {strides = array<i32>} : memref<8x8x512xf32, #tpu.memory_space<vmem>>, vector<8x8x32xf32>,
    %24 = vector.extract_strided_slice %12 {offsets = [0, 0, 64], sizes = [8, 8, 32], strides = [1, 1, 1]} : vector<8x8x128xf32> to vector<8x8x32xf32>
    %c0_25 = arith.constant 0 : index
    %c0_26 = arith.constant 0 : index
    %c256 = arith.constant 256 : index
    %25 = vector.load %arg12[%c0_25, %c0_26, %c256] : memref<8x8x512xf32, #tpu.memory_space<vmem>>, vector<8x8x32xf32>
    tpu.vector_store %arg12[%c0_25, %c0_26, %c256], %24 {strides = array<i32>} : memref<8x8x512xf32, #tpu.memory_space<vmem>>, vector<8x8x32xf32>,
    %26 = vector.extract_strided_slice %13 {offsets = [0, 0, 64], sizes = [8, 8, 32], strides = [1, 1, 1]} : vector<8x8x128xf32> to vector<8x8x32xf32>
    %c0_27 = arith.constant 0 : index
    %c0_28 = arith.constant 0 : index
    %c288 = arith.constant 288 : index
    %27 = vector.load %arg12[%c0_27, %c0_28, %c288] : memref<8x8x512xf32, #tpu.memory_space<vmem>>, vector<8x8x32xf32>
    tpu.vector_store %arg12[%c0_27, %c0_28, %c288], %26 {strides = array<i32>} : memref<8x8x512xf32, #tpu.memory_space<vmem>>, vector<8x8x32xf32>,
    %28 = vector.extract_strided_slice %12 {offsets = [0, 0, 96], sizes = [8, 8, 32], strides = [1, 1, 1]} : vector<8x8x128xf32> to vector<8x8x32xf32>
    %c0_29 = arith.constant 0 : index
    %c0_30 = arith.constant 0 : index
    %c384 = arith.constant 384 : index
    %29 = vector.load %arg12[%c0_29, %c0_30, %c384] : memref<8x8x512xf32, #tpu.memory_space<vmem>>, vector<8x8x32xf32>
    tpu.vector_store %arg12[%c0_29, %c0_30, %c384], %28 {strides = array<i32>} : memref<8x8x512xf32, #tpu.memory_space<vmem>>, vector<8x8x32xf32>,
    %30 = vector.extract_strided_slice %13 {offsets = [0, 0, 96], sizes = [8, 8, 32], strides = [1, 1, 1]} : vector<8x8x128xf32> to vector<8x8x32xf32>
    %c0_31 = arith.constant 0 : index
    %c0_32 = arith.constant 0 : index
    %c416 = arith.constant 416 : index
    %31 = vector.load %arg12[%c0_31, %c0_32, %c416] : memref<8x8x512xf32, #tpu.memory_space<vmem>>, vector<8x8x32xf32>
    tpu.vector_store %arg12[%c0_31, %c0_32, %c416], %30 {strides = array<i32>} : memref<8x8x512xf32, #tpu.memory_space<vmem>>, vector<8x8x32xf32>,
    %c0_33 = arith.constant 0 : index
    %c0_34 = arith.constant 0 : index
    %32 = vector.load %arg5[%c0_33, %c0_34] : memref<128x512xbf16, #tpu.memory_space<vmem>>, vector<128x512xbf16>
    %cst_35 = arith.constant 0.000000e+00 : f32
    %33 = vector.broadcast %cst_35 : f32 to vector<8x128xf32>
    %c0_i32 = arith.constant 0 : i32
    %34 = arith.index_cast %c0_i32 : i32 to index
    %c0_36 = arith.constant 0 : index
    %c0_37 = arith.constant 0 : index
    %35 = vector.load %arg12[%34, %c0_36, %c0_37] : memref<8x8x512xf32, #tpu.memory_space<vmem>>, vector<1x8x512xf32>
    %36 = vector.shape_cast %35 : vector<1x8x512xf32> to vector<8x512xf32>
    %37 = arith.truncf %33 : vector<8x128xf32> to vector<8x128xbf16>
    %cst_38 = arith.constant dense<0.000000e+00> : vector<8x512xf32>
    %38 = tpu.matmul %37, %32, %cst_38 {dimension_numbers = #tpu.dot_dimension_numbers<[1], [0], [0], [1], [0, 0, 1, 1], [], []>} : vector<8x128xbf16>, vector<128x512xbf16>, vector<8x512xf32> -> vector<8x512xf32>
    %39 = arith.addf %36, %38 : vector<8x512xf32>
    %40 = vector.extract_strided_slice %39 {offsets = [0, 0], sizes = [8, 128], strides = [1, 1]} : vector<8x512xf32> to vector<8x128xf32>
    %41 = arith.negf %40 : vector<8x128xf32>
    %42 = math.exp %41 : vector<8x128xf32>
    %cst_39 = arith.constant 1.000000e+00 : f32
    %43 = vector.broadcast %cst_39 : f32 to vector<8x128xf32>
    %44 = arith.addf %43, %42 : vector<8x128xf32>
    %45 = arith.divf %43, %44 : vector<8x128xf32>
    %46 = vector.extract_strided_slice %39 {offsets = [0, 128], sizes = [8, 128], strides = [1, 1]} : vector<8x512xf32> to vector<8x128xf32>
    %47 = arith.negf %46 : vector<8x128xf32>
    %48 = math.exp %47 : vector<8x128xf32>
    %cst_40 = arith.constant 1.000000e+00 : f32
    %49 = vector.broadcast %cst_40 : f32 to vector<8x128xf32>
    %50 = arith.addf %49, %48 : vector<8x128xf32>
    %51 = arith.divf %49, %50 : vector<8x128xf32>
    %52 = vector.extract_strided_slice %39 {offsets = [0, 256], sizes = [8, 128], strides = [1, 1]} : vector<8x512xf32> to vector<8x128xf32>
    %53 = math.tanh %52 : vector<8x128xf32>
    %54 = vector.extract_strided_slice %39 {offsets = [0, 384], sizes = [8, 128], strides = [1, 1]} : vector<8x512xf32> to vector<8x128xf32>
    %55 = arith.negf %54 : vector<8x128xf32>
    %56 = math.exp %55 : vector<8x128xf32>
    %cst_41 = arith.constant 1.000000e+00 : f32
    %57 = vector.broadcast %cst_41 : f32 to vector<8x128xf32>
    %58 = arith.addf %57, %56 : vector<8x128xf32>
    %59 = arith.divf %57, %58 : vector<8x128xf32>
    %60 = arith.mulf %51, %33 : vector<8x128xf32>
    %61 = arith.mulf %45, %53 : vector<8x128xf32>
    %62 = arith.addf %60, %61 : vector<8x128xf32>
    %63 = math.tanh %62 : vector<8x128xf32>
    %64 = arith.mulf %59, %63 : vector<8x128xf32>
    %65 = arith.index_cast %c0_i32 : i32 to index
    %c0_42 = arith.constant 0 : index
    %c0_43 = arith.constant 0 : index
    %66 = vector.load %arg13[%65, %c0_42, %c0_43] : memref<8x8x128xf32, #tpu.memory_space<vmem>>, vector<1x8x128xf32>
    %67 = vector.shape_cast %66 : vector<1x8x128xf32> to vector<8x128xf32>
    %68 = vector.shape_cast %64 : vector<8x128xf32> to vector<1x8x128xf32>
    tpu.vector_store %arg13[%65, %c0_42, %c0_43], %68 {strides = array<i32>} : memref<8x8x128xf32, #tpu.memory_space<vmem>>, vector<1x8x128xf32>,
    %c1_i32 = arith.constant 1 : i32
    %69 = arith.index_cast %c1_i32 : i32 to index
    %c0_44 = arith.constant 0 : index
    %c0_45 = arith.constant 0 : index
    %70 = vector.load %arg12[%69, %c0_44, %c0_45] : memref<8x8x512xf32, #tpu.memory_space<vmem>>, vector<1x8x512xf32>
    %71 = vector.shape_cast %70 : vector<1x8x512xf32> to vector<8x512xf32>
    %72 = arith.truncf %64 : vector<8x128xf32> to vector<8x128xbf16>
    %cst_46 = arith.constant dense<0.000000e+00> : vector<8x512xf32>
    %73 = tpu.matmul %72, %32, %cst_46 {dimension_numbers = #tpu.dot_dimension_numbers<[1], [0], [0], [1], [0, 0, 1, 1], [], []>} : vector<8x128xbf16>, vector<128x512xbf16>, vector<8x512xf32> -> vector<8x512xf32>
    %74 = arith.addf %71, %73 : vector<8x512xf32>
    %75 = vector.extract_strided_slice %74 {offsets = [0, 0], sizes = [8, 128], strides = [1, 1]} : vector<8x512xf32> to vector<8x128xf32>
    %76 = arith.negf %75 : vector<8x128xf32>
    %77 = math.exp %76 : vector<8x128xf32>
    %cst_47 = arith.constant 1.000000e+00 : f32
    %78 = vector.broadcast %cst_47 : f32 to vector<8x128xf32>
    %79 = arith.addf %78, %77 : vector<8x128xf32>
    %80 = arith.divf %78, %79 : vector<8x128xf32>
    %81 = vector.extract_strided_slice %74 {offsets = [0, 128], sizes = [8, 128], strides = [1, 1]} : vector<8x512xf32> to vector<8x128xf32>
    %82 = arith.negf %81 : vector<8x128xf32>
    %83 = math.exp %82 : vector<8x128xf32>
    %cst_48 = arith.constant 1.000000e+00 : f32
    %84 = vector.broadcast %cst_48 : f32 to vector<8x128xf32>
    %85 = arith.addf %84, %83 : vector<8x128xf32>
    %86 = arith.divf %84, %85 : vector<8x128xf32>
    %87 = vector.extract_strided_slice %74 {offsets = [0, 256], sizes = [8, 128], strides = [1, 1]} : vector<8x512xf32> to vector<8x128xf32>
    %88 = math.tanh %87 : vector<8x128xf32>
    %89 = vector.extract_strided_slice %74 {offsets = [0, 384], sizes = [8, 128], strides = [1, 1]} : vector<8x512xf32> to vector<8x128xf32>
    %90 = arith.negf %89 : vector<8x128xf32>
    %91 = math.exp %90 : vector<8x128xf32>
    %cst_49 = arith.constant 1.000000e+00 : f32
    %92 = vector.broadcast %cst_49 : f32 to vector<8x128xf32>
    %93 = arith.addf %92, %91 : vector<8x128xf32>
    %94 = arith.divf %92, %93 : vector<8x128xf32>
    %95 = arith.mulf %86, %62 : vector<8x128xf32>
    %96 = arith.mulf %80, %88 : vector<8x128xf32>
    %97 = arith.addf %95, %96 : vector<8x128xf32>
    %98 = math.tanh %97 : vector<8x128xf32>
    %99 = arith.mulf %94, %98 : vector<8x128xf32>
    %100 = arith.index_cast %c1_i32 : i32 to index
    %c0_50 = arith.constant 0 : index
    %c0_51 = arith.constant 0 : index
    %101 = vector.load %arg13[%100, %c0_50, %c0_51] : memref<8x8x128xf32, #tpu.memory_space<vmem>>, vector<1x8x128xf32>
    %102 = vector.shape_cast %101 : vector<1x8x128xf32> to vector<8x128xf32>
    %103 = vector.shape_cast %99 : vector<8x128xf32> to vector<1x8x128xf32>
    tpu.vector_store %arg13[%100, %c0_50, %c0_51], %103 {strides = array<i32>} : memref<8x8x128xf32, #tpu.memory_space<vmem>>, vector<1x8x128xf32>,
    %c2_i32 = arith.constant 2 : i32
    %104 = arith.index_cast %c2_i32 : i32 to index
    %c0_52 = arith.constant 0 : index
    %c0_53 = arith.constant 0 : index
    %105 = vector.load %arg12[%104, %c0_52, %c0_53] : memref<8x8x512xf32, #tpu.memory_space<vmem>>, vector<1x8x512xf32>
    %106 = vector.shape_cast %105 : vector<1x8x512xf32> to vector<8x512xf32>
    %107 = arith.truncf %99 : vector<8x128xf32> to vector<8x128xbf16>
    %cst_54 = arith.constant dense<0.000000e+00> : vector<8x512xf32>
    %108 = tpu.matmul %107, %32, %cst_54 {dimension_numbers = #tpu.dot_dimension_numbers<[1], [0], [0], [1], [0, 0, 1, 1], [], []>} : vector<8x128xbf16>, vector<128x512xbf16>, vector<8x512xf32> -> vector<8x512xf32>
    %109 = arith.addf %106, %108 : vector<8x512xf32>
    %110 = vector.extract_strided_slice %109 {offsets = [0, 0], sizes = [8, 128], strides = [1, 1]} : vector<8x512xf32> to vector<8x128xf32>
    %111 = arith.negf %110 : vector<8x128xf32>
    %112 = math.exp %111 : vector<8x128xf32>
    %cst_55 = arith.constant 1.000000e+00 : f32
    %113 = vector.broadcast %cst_55 : f32 to vector<8x128xf32>
    %114 = arith.addf %113, %112 : vector<8x128xf32>
    %115 = arith.divf %113, %114 : vector<8x128xf32>
    %116 = vector.extract_strided_slice %109 {offsets = [0, 128], sizes = [8, 128], strides = [1, 1]} : vector<8x512xf32> to vector<8x128xf32>
    %117 = arith.negf %116 : vector<8x128xf32>
    %118 = math.exp %117 : vector<8x128xf32>
    %cst_56 = arith.constant 1.000000e+00 : f32
    %119 = vector.broadcast %cst_56 : f32 to vector<8x128xf32>
    %120 = arith.addf %119, %118 : vector<8x128xf32>
    %121 = arith.divf %119, %120 : vector<8x128xf32>
    %122 = vector.extract_strided_slice %109 {offsets = [0, 256], sizes = [8, 128], strides = [1, 1]} : vector<8x512xf32> to vector<8x128xf32>
    %123 = math.tanh %122 : vector<8x128xf32>
    %124 = vector.extract_strided_slice %109 {offsets = [0, 384], sizes = [8, 128], strides = [1, 1]} : vector<8x512xf32> to vector<8x128xf32>
    %125 = arith.negf %124 : vector<8x128xf32>
    %126 = math.exp %125 : vector<8x128xf32>
    %cst_57 = arith.constant 1.000000e+00 : f32
    %127 = vector.broadcast %cst_57 : f32 to vector<8x128xf32>
    %128 = arith.addf %127, %126 : vector<8x128xf32>
    %129 = arith.divf %127, %128 : vector<8x128xf32>
    %130 = arith.mulf %121, %97 : vector<8x128xf32>
    %131 = arith.mulf %115, %123 : vector<8x128xf32>
    %132 = arith.addf %130, %131 : vector<8x128xf32>
    %133 = math.tanh %132 : vector<8x128xf32>
    %134 = arith.mulf %129, %133 : vector<8x128xf32>
    %135 = arith.index_cast %c2_i32 : i32 to index
    %c0_58 = arith.constant 0 : index
    %c0_59 = arith.constant 0 : index
    %136 = vector.load %arg13[%135, %c0_58, %c0_59] : memref<8x8x128xf32, #tpu.memory_space<vmem>>, vector<1x8x128xf32>
    %137 = vector.shape_cast %136 : vector<1x8x128xf32> to vector<8x128xf32>
    %138 = vector.shape_cast %134 : vector<8x128xf32> to vector<1x8x128xf32>
    tpu.vector_store %arg13[%135, %c0_58, %c0_59], %138 {strides = array<i32>} : memref<8x8x128xf32, #tpu.memory_space<vmem>>, vector<1x8x128xf32>,
    %c3_i32 = arith.constant 3 : i32
    %139 = arith.index_cast %c3_i32 : i32 to index
    %c0_60 = arith.constant 0 : index
    %c0_61 = arith.constant 0 : index
    %140 = vector.load %arg12[%139, %c0_60, %c0_61] : memref<8x8x512xf32, #tpu.memory_space<vmem>>, vector<1x8x512xf32>
    %141 = vector.shape_cast %140 : vector<1x8x512xf32> to vector<8x512xf32>
    %142 = arith.truncf %134 : vector<8x128xf32> to vector<8x128xbf16>
    %cst_62 = arith.constant dense<0.000000e+00> : vector<8x512xf32>
    %143 = tpu.matmul %142, %32, %cst_62 {dimension_numbers = #tpu.dot_dimension_numbers<[1], [0], [0], [1], [0, 0, 1, 1], [], []>} : vector<8x128xbf16>, vector<128x512xbf16>, vector<8x512xf32> -> vector<8x512xf32>
    %144 = arith.addf %141, %143 : vector<8x512xf32>
    %145 = vector.extract_strided_slice %144 {offsets = [0, 0], sizes = [8, 128], strides = [1, 1]} : vector<8x512xf32> to vector<8x128xf32>
    %146 = arith.negf %145 : vector<8x128xf32>
    %147 = math.exp %146 : vector<8x128xf32>
    %cst_63 = arith.constant 1.000000e+00 : f32
    %148 = vector.broadcast %cst_63 : f32 to vector<8x128xf32>
    %149 = arith.addf %148, %147 : vector<8x128xf32>
    %150 = arith.divf %148, %149 : vector<8x128xf32>
    %151 = vector.extract_strided_slice %144 {offsets = [0, 128], sizes = [8, 128], strides = [1, 1]} : vector<8x512xf32> to vector<8x128xf32>
    %152 = arith.negf %151 : vector<8x128xf32>
    %153 = math.exp %152 : vector<8x128xf32>
    %cst_64 = arith.constant 1.000000e+00 : f32
    %154 = vector.broadcast %cst_64 : f32 to vector<8x128xf32>
    %155 = arith.addf %154, %153 : vector<8x128xf32>
    %156 = arith.divf %154, %155 : vector<8x128xf32>
    %157 = vector.extract_strided_slice %144 {offsets = [0, 256], sizes = [8, 128], strides = [1, 1]} : vector<8x512xf32> to vector<8x128xf32>
    %158 = math.tanh %157 : vector<8x128xf32>
    %159 = vector.extract_strided_slice %144 {offsets = [0, 384], sizes = [8, 128], strides = [1, 1]} : vector<8x512xf32> to vector<8x128xf32>
    %160 = arith.negf %159 : vector<8x128xf32>
    %161 = math.exp %160 : vector<8x128xf32>
    %cst_65 = arith.constant 1.000000e+00 : f32
    %162 = vector.broadcast %cst_65 : f32 to vector<8x128xf32>
    %163 = arith.addf %162, %161 : vector<8x128xf32>
    %164 = arith.divf %162, %163 : vector<8x128xf32>
    %165 = arith.mulf %156, %132 : vector<8x128xf32>
    %166 = arith.mulf %150, %158 : vector<8x128xf32>
    %167 = arith.addf %165, %166 : vector<8x128xf32>
    %168 = math.tanh %167 : vector<8x128xf32>
    %169 = arith.mulf %164, %168 : vector<8x128xf32>
    %170 = arith.index_cast %c3_i32 : i32 to index
    %c0_66 = arith.constant 0 : index
    %c0_67 = arith.constant 0 : index
    %171 = vector.load %arg13[%170, %c0_66, %c0_67] : memref<8x8x128xf32, #tpu.memory_space<vmem>>, vector<1x8x128xf32>
    %172 = vector.shape_cast %171 : vector<1x8x128xf32> to vector<8x128xf32>
    %173 = vector.shape_cast %169 : vector<8x128xf32> to vector<1x8x128xf32>
    tpu.vector_store %arg13[%170, %c0_66, %c0_67], %173 {strides = array<i32>} : memref<8x8x128xf32, #tpu.memory_space<vmem>>, vector<1x8x128xf32>,
    %c4_i32 = arith.constant 4 : i32
    %174 = arith.index_cast %c4_i32 : i32 to index
    %c0_68 = arith.constant 0 : index
    %c0_69 = arith.constant 0 : index
    %175 = vector.load %arg12[%174, %c0_68, %c0_69] : memref<8x8x512xf32, #tpu.memory_space<vmem>>, vector<1x8x512xf32>
    %176 = vector.shape_cast %175 : vector<1x8x512xf32> to vector<8x512xf32>
    %177 = arith.truncf %169 : vector<8x128xf32> to vector<8x128xbf16>
    %cst_70 = arith.constant dense<0.000000e+00> : vector<8x512xf32>
    %178 = tpu.matmul %177, %32, %cst_70 {dimension_numbers = #tpu.dot_dimension_numbers<[1], [0], [0], [1], [0, 0, 1, 1], [], []>} : vector<8x128xbf16>, vector<128x512xbf16>, vector<8x512xf32> -> vector<8x512xf32>
    %179 = arith.addf %176, %178 : vector<8x512xf32>
    %180 = vector.extract_strided_slice %179 {offsets = [0, 0], sizes = [8, 128], strides = [1, 1]} : vector<8x512xf32> to vector<8x128xf32>
    %181 = arith.negf %180 : vector<8x128xf32>
    %182 = math.exp %181 : vector<8x128xf32>
    %cst_71 = arith.constant 1.000000e+00 : f32
    %183 = vector.broadcast %cst_71 : f32 to vector<8x128xf32>
    %184 = arith.addf %183, %182 : vector<8x128xf32>
    %185 = arith.divf %183, %184 : vector<8x128xf32>
    %186 = vector.extract_strided_slice %179 {offsets = [0, 128], sizes = [8, 128], strides = [1, 1]} : vector<8x512xf32> to vector<8x128xf32>
    %187 = arith.negf %186 : vector<8x128xf32>
    %188 = math.exp %187 : vector<8x128xf32>
    %cst_72 = arith.constant 1.000000e+00 : f32
    %189 = vector.broadcast %cst_72 : f32 to vector<8x128xf32>
    %190 = arith.addf %189, %188 : vector<8x128xf32>
    %191 = arith.divf %189, %190 : vector<8x128xf32>
    %192 = vector.extract_strided_slice %179 {offsets = [0, 256], sizes = [8, 128], strides = [1, 1]} : vector<8x512xf32> to vector<8x128xf32>
    %193 = math.tanh %192 : vector<8x128xf32>
    %194 = vector.extract_strided_slice %179 {offsets = [0, 384], sizes = [8, 128], strides = [1, 1]} : vector<8x512xf32> to vector<8x128xf32>
    %195 = arith.negf %194 : vector<8x128xf32>
    %196 = math.exp %195 : vector<8x128xf32>
    %cst_73 = arith.constant 1.000000e+00 : f32
    %197 = vector.broadcast %cst_73 : f32 to vector<8x128xf32>
    %198 = arith.addf %197, %196 : vector<8x128xf32>
    %199 = arith.divf %197, %198 : vector<8x128xf32>
    %200 = arith.mulf %191, %167 : vector<8x128xf32>
    %201 = arith.mulf %185, %193 : vector<8x128xf32>
    %202 = arith.addf %200, %201 : vector<8x128xf32>
    %203 = math.tanh %202 : vector<8x128xf32>
    %204 = arith.mulf %199, %203 : vector<8x128xf32>
    %205 = arith.index_cast %c4_i32 : i32 to index
    %c0_74 = arith.constant 0 : index
    %c0_75 = arith.constant 0 : index
    %206 = vector.load %arg13[%205, %c0_74, %c0_75] : memref<8x8x128xf32, #tpu.memory_space<vmem>>, vector<1x8x128xf32>
    %207 = vector.shape_cast %206 : vector<1x8x128xf32> to vector<8x128xf32>
    %208 = vector.shape_cast %204 : vector<8x128xf32> to vector<1x8x128xf32>
    tpu.vector_store %arg13[%205, %c0_74, %c0_75], %208 {strides = array<i32>} : memref<8x8x128xf32, #tpu.memory_space<vmem>>, vector<1x8x128xf32>,
    %c5_i32 = arith.constant 5 : i32
    %209 = arith.index_cast %c5_i32 : i32 to index
    %c0_76 = arith.constant 0 : index
    %c0_77 = arith.constant 0 : index
    %210 = vector.load %arg12[%209, %c0_76, %c0_77] : memref<8x8x512xf32, #tpu.memory_space<vmem>>, vector<1x8x512xf32>
    %211 = vector.shape_cast %210 : vector<1x8x512xf32> to vector<8x512xf32>
    %212 = arith.truncf %204 : vector<8x128xf32> to vector<8x128xbf16>
    %cst_78 = arith.constant dense<0.000000e+00> : vector<8x512xf32>
    %213 = tpu.matmul %212, %32, %cst_78 {dimension_numbers = #tpu.dot_dimension_numbers<[1], [0], [0], [1], [0, 0, 1, 1], [], []>} : vector<8x128xbf16>, vector<128x512xbf16>, vector<8x512xf32> -> vector<8x512xf32>
    %214 = arith.addf %211, %213 : vector<8x512xf32>
    %215 = vector.extract_strided_slice %214 {offsets = [0, 0], sizes = [8, 128], strides = [1, 1]} : vector<8x512xf32> to vector<8x128xf32>
    %216 = arith.negf %215 : vector<8x128xf32>
    %217 = math.exp %216 : vector<8x128xf32>
    %cst_79 = arith.constant 1.000000e+00 : f32
    %218 = vector.broadcast %cst_79 : f32 to vector<8x128xf32>
    %219 = arith.addf %218, %217 : vector<8x128xf32>
    %220 = arith.divf %218, %219 : vector<8x128xf32>
    %221 = vector.extract_strided_slice %214 {offsets = [0, 128], sizes = [8, 128], strides = [1, 1]} : vector<8x512xf32> to vector<8x128xf32>
    %222 = arith.negf %221 : vector<8x128xf32>
    %223 = math.exp %222 : vector<8x128xf32>
    %cst_80 = arith.constant 1.000000e+00 : f32
    %224 = vector.broadcast %cst_80 : f32 to vector<8x128xf32>
    %225 = arith.addf %224, %223 : vector<8x128xf32>
    %226 = arith.divf %224, %225 : vector<8x128xf32>
    %227 = vector.extract_strided_slice %214 {offsets = [0, 256], sizes = [8, 128], strides = [1, 1]} : vector<8x512xf32> to vector<8x128xf32>
    %228 = math.tanh %227 : vector<8x128xf32>
    %229 = vector.extract_strided_slice %214 {offsets = [0, 384], sizes = [8, 128], strides = [1, 1]} : vector<8x512xf32> to vector<8x128xf32>
    %230 = arith.negf %229 : vector<8x128xf32>
    %231 = math.exp %230 : vector<8x128xf32>
    %cst_81 = arith.constant 1.000000e+00 : f32
    %232 = vector.broadcast %cst_81 : f32 to vector<8x128xf32>
    %233 = arith.addf %232, %231 : vector<8x128xf32>
    %234 = arith.divf %232, %233 : vector<8x128xf32>
    %235 = arith.mulf %226, %202 : vector<8x128xf32>
    %236 = arith.mulf %220, %228 : vector<8x128xf32>
    %237 = arith.addf %235, %236 : vector<8x128xf32>
    %238 = math.tanh %237 : vector<8x128xf32>
    %239 = arith.mulf %234, %238 : vector<8x128xf32>
    %240 = arith.index_cast %c5_i32 : i32 to index
    %c0_82 = arith.constant 0 : index
    %c0_83 = arith.constant 0 : index
    %241 = vector.load %arg13[%240, %c0_82, %c0_83] : memref<8x8x128xf32, #tpu.memory_space<vmem>>, vector<1x8x128xf32>
    %242 = vector.shape_cast %241 : vector<1x8x128xf32> to vector<8x128xf32>
    %243 = vector.shape_cast %239 : vector<8x128xf32> to vector<1x8x128xf32>
    tpu.vector_store %arg13[%240, %c0_82, %c0_83], %243 {strides = array<i32>} : memref<8x8x128xf32, #tpu.memory_space<vmem>>, vector<1x8x128xf32>,
    %c6_i32 = arith.constant 6 : i32
    %244 = arith.index_cast %c6_i32 : i32 to index
    %c0_84 = arith.constant 0 : index
    %c0_85 = arith.constant 0 : index
    %245 = vector.load %arg12[%244, %c0_84, %c0_85] : memref<8x8x512xf32, #tpu.memory_space<vmem>>, vector<1x8x512xf32>
    %246 = vector.shape_cast %245 : vector<1x8x512xf32> to vector<8x512xf32>
    %247 = arith.truncf %239 : vector<8x128xf32> to vector<8x128xbf16>
    %cst_86 = arith.constant dense<0.000000e+00> : vector<8x512xf32>
    %248 = tpu.matmul %247, %32, %cst_86 {dimension_numbers = #tpu.dot_dimension_numbers<[1], [0], [0], [1], [0, 0, 1, 1], [], []>} : vector<8x128xbf16>, vector<128x512xbf16>, vector<8x512xf32> -> vector<8x512xf32>
    %249 = arith.addf %246, %248 : vector<8x512xf32>
    %250 = vector.extract_strided_slice %249 {offsets = [0, 0], sizes = [8, 128], strides = [1, 1]} : vector<8x512xf32> to vector<8x128xf32>
    %251 = arith.negf %250 : vector<8x128xf32>
    %252 = math.exp %251 : vector<8x128xf32>
    %cst_87 = arith.constant 1.000000e+00 : f32
    %253 = vector.broadcast %cst_87 : f32 to vector<8x128xf32>
    %254 = arith.addf %253, %252 : vector<8x128xf32>
    %255 = arith.divf %253, %254 : vector<8x128xf32>
    %256 = vector.extract_strided_slice %249 {offsets = [0, 128], sizes = [8, 128], strides = [1, 1]} : vector<8x512xf32> to vector<8x128xf32>
    %257 = arith.negf %256 : vector<8x128xf32>
    %258 = math.exp %257 : vector<8x128xf32>
    %cst_88 = arith.constant 1.000000e+00 : f32
    %259 = vector.broadcast %cst_88 : f32 to vector<8x128xf32>
    %260 = arith.addf %259, %258 : vector<8x128xf32>
    %261 = arith.divf %259, %260 : vector<8x128xf32>
    %262 = vector.extract_strided_slice %249 {offsets = [0, 256], sizes = [8, 128], strides = [1, 1]} : vector<8x512xf32> to vector<8x128xf32>
    %263 = math.tanh %262 : vector<8x128xf32>
    %264 = vector.extract_strided_slice %249 {offsets = [0, 384], sizes = [8, 128], strides = [1, 1]} : vector<8x512xf32> to vector<8x128xf32>
    %265 = arith.negf %264 : vector<8x128xf32>
    %266 = math.exp %265 : vector<8x128xf32>
    %cst_89 = arith.constant 1.000000e+00 : f32
    %267 = vector.broadcast %cst_89 : f32 to vector<8x128xf32>
    %268 = arith.addf %267, %266 : vector<8x128xf32>
    %269 = arith.divf %267, %268 : vector<8x128xf32>
    %270 = arith.mulf %261, %237 : vector<8x128xf32>
    %271 = arith.mulf %255, %263 : vector<8x128xf32>
    %272 = arith.addf %270, %271 : vector<8x128xf32>
    %273 = math.tanh %272 : vector<8x128xf32>
    %274 = arith.mulf %269, %273 : vector<8x128xf32>
    %275 = arith.index_cast %c6_i32 : i32 to index
    %c0_90 = arith.constant 0 : index
    %c0_91 = arith.constant 0 : index
    %276 = vector.load %arg13[%275, %c0_90, %c0_91] : memref<8x8x128xf32, #tpu.memory_space<vmem>>, vector<1x8x128xf32>
    %277 = vector.shape_cast %276 : vector<1x8x128xf32> to vector<8x128xf32>
    %278 = vector.shape_cast %274 : vector<8x128xf32> to vector<1x8x128xf32>
    tpu.vector_store %arg13[%275, %c0_90, %c0_91], %278 {strides = array<i32>} : memref<8x8x128xf32, #tpu.memory_space<vmem>>, vector<1x8x128xf32>,
    %c7_i32 = arith.constant 7 : i32
    %279 = arith.index_cast %c7_i32 : i32 to index
    %c0_92 = arith.constant 0 : index
    %c0_93 = arith.constant 0 : index
    %280 = vector.load %arg12[%279, %c0_92, %c0_93] : memref<8x8x512xf32, #tpu.memory_space<vmem>>, vector<1x8x512xf32>
    %281 = vector.shape_cast %280 : vector<1x8x512xf32> to vector<8x512xf32>
    %282 = arith.truncf %274 : vector<8x128xf32> to vector<8x128xbf16>
    %cst_94 = arith.constant dense<0.000000e+00> : vector<8x512xf32>
    %283 = tpu.matmul %282, %32, %cst_94 {dimension_numbers = #tpu.dot_dimension_numbers<[1], [0], [0], [1], [0, 0, 1, 1], [], []>} : vector<8x128xbf16>, vector<128x512xbf16>, vector<8x512xf32> -> vector<8x512xf32>
    %284 = arith.addf %281, %283 : vector<8x512xf32>
    %285 = vector.extract_strided_slice %284 {offsets = [0, 0], sizes = [8, 128], strides = [1, 1]} : vector<8x512xf32> to vector<8x128xf32>
    %286 = arith.negf %285 : vector<8x128xf32>
    %287 = math.exp %286 : vector<8x128xf32>
    %cst_95 = arith.constant 1.000000e+00 : f32
    %288 = vector.broadcast %cst_95 : f32 to vector<8x128xf32>
    %289 = arith.addf %288, %287 : vector<8x128xf32>
    %290 = arith.divf %288, %289 : vector<8x128xf32>
    %291 = vector.extract_strided_slice %284 {offsets = [0, 128], sizes = [8, 128], strides = [1, 1]} : vector<8x512xf32> to vector<8x128xf32>
    %292 = arith.negf %291 : vector<8x128xf32>
    %293 = math.exp %292 : vector<8x128xf32>
    %cst_96 = arith.constant 1.000000e+00 : f32
    %294 = vector.broadcast %cst_96 : f32 to vector<8x128xf32>
    %295 = arith.addf %294, %293 : vector<8x128xf32>
    %296 = arith.divf %294, %295 : vector<8x128xf32>
    %297 = vector.extract_strided_slice %284 {offsets = [0, 256], sizes = [8, 128], strides = [1, 1]} : vector<8x512xf32> to vector<8x128xf32>
    %298 = math.tanh %297 : vector<8x128xf32>
    %299 = vector.extract_strided_slice %284 {offsets = [0, 384], sizes = [8, 128], strides = [1, 1]} : vector<8x512xf32> to vector<8x128xf32>
    %300 = arith.negf %299 : vector<8x128xf32>
    %301 = math.exp %300 : vector<8x128xf32>
    %cst_97 = arith.constant 1.000000e+00 : f32
    %302 = vector.broadcast %cst_97 : f32 to vector<8x128xf32>
    %303 = arith.addf %302, %301 : vector<8x128xf32>
    %304 = arith.divf %302, %303 : vector<8x128xf32>
    %305 = arith.mulf %296, %272 : vector<8x128xf32>
    %306 = arith.mulf %290, %298 : vector<8x128xf32>
    %307 = arith.addf %305, %306 : vector<8x128xf32>
    %308 = math.tanh %307 : vector<8x128xf32>
    %309 = arith.mulf %304, %308 : vector<8x128xf32>
    %310 = arith.index_cast %c7_i32 : i32 to index
    %c0_98 = arith.constant 0 : index
    %c0_99 = arith.constant 0 : index
    %311 = vector.load %arg13[%310, %c0_98, %c0_99] : memref<8x8x128xf32, #tpu.memory_space<vmem>>, vector<1x8x128xf32>
    %312 = vector.shape_cast %311 : vector<1x8x128xf32> to vector<8x128xf32>
    %313 = vector.shape_cast %309 : vector<8x128xf32> to vector<1x8x128xf32>
    tpu.vector_store %arg13[%310, %c0_98, %c0_99], %313 {strides = array<i32>} : memref<8x8x128xf32, #tpu.memory_space<vmem>>, vector<1x8x128xf32>,
    %c8_i32 = arith.constant 8 : i32
    %c0_100 = arith.constant 0 : index
    %c0_101 = arith.constant 0 : index
    %c0_102 = arith.constant 0 : index
    %314 = vector.load %arg13[%c0_100, %c0_101, %c0_102] : memref<8x8x128xf32, #tpu.memory_space<vmem>>, vector<8x8x128xf32>
    %315 = vector.shape_cast %314 : vector<8x8x128xf32> to vector<64x128xf32>
    %316 = arith.truncf %315 : vector<64x128xf32> to vector<64x128xbf16>
    %c7 = arith.constant 7 : index
    %c0_103 = arith.constant 0 : index
    %c0_104 = arith.constant 0 : index
    %317 = vector.load %arg13[%c7, %c0_103, %c0_104] : memref<8x8x128xf32, #tpu.memory_space<vmem>>, vector<1x8x128xf32>
    %318 = vector.shape_cast %317 : vector<1x8x128xf32> to vector<8x128xf32>
    %c6 = arith.constant 6 : index
    %c0_105 = arith.constant 0 : index
    %c0_106 = arith.constant 0 : index
    %319 = vector.load %arg13[%c6, %c0_105, %c0_106] : memref<8x8x128xf32, #tpu.memory_space<vmem>>, vector<1x8x128xf32>
    %320 = vector.shape_cast %319 : vector<1x8x128xf32> to vector<8x128xf32>
    %c5 = arith.constant 5 : index
    %c0_107 = arith.constant 0 : index
    %c0_108 = arith.constant 0 : index
    %321 = vector.load %arg13[%c5, %c0_107, %c0_108] : memref<8x8x128xf32, #tpu.memory_space<vmem>>, vector<1x8x128xf32>
    %322 = vector.shape_cast %321 : vector<1x8x128xf32> to vector<8x128xf32>
    %c4 = arith.constant 4 : index
    %c0_109 = arith.constant 0 : index
    %c0_110 = arith.constant 0 : index
    %323 = vector.load %arg13[%c4, %c0_109, %c0_110] : memref<8x8x128xf32, #tpu.memory_space<vmem>>, vector<1x8x128xf32>
    %324 = vector.shape_cast %323 : vector<1x8x128xf32> to vector<8x128xf32>
    %c3 = arith.constant 3 : index
    %c0_111 = arith.constant 0 : index
    %c0_112 = arith.constant 0 : index
    %325 = vector.load %arg13[%c3, %c0_111, %c0_112] : memref<8x8x128xf32, #tpu.memory_space<vmem>>, vector<1x8x128xf32>
    %326 = vector.shape_cast %325 : vector<1x8x128xf32> to vector<8x128xf32>
    %c2 = arith.constant 2 : index
    %c0_113 = arith.constant 0 : index
    %c0_114 = arith.constant 0 : index
    %327 = vector.load %arg13[%c2, %c0_113, %c0_114] : memref<8x8x128xf32, #tpu.memory_space<vmem>>, vector<1x8x128xf32>
    %328 = vector.shape_cast %327 : vector<1x8x128xf32> to vector<8x128xf32>
    %c1 = arith.constant 1 : index
    %c0_115 = arith.constant 0 : index
    %c0_116 = arith.constant 0 : index
    %329 = vector.load %arg13[%c1, %c0_115, %c0_116] : memref<8x8x128xf32, #tpu.memory_space<vmem>>, vector<1x8x128xf32>
    %330 = vector.shape_cast %329 : vector<1x8x128xf32> to vector<8x128xf32>
    %c0_117 = arith.constant 0 : index
    %c0_118 = arith.constant 0 : index
    %c0_119 = arith.constant 0 : index
    %331 = vector.load %arg13[%c0_117, %c0_118, %c0_119] : memref<8x8x128xf32, #tpu.memory_space<vmem>>, vector<1x8x128xf32>
    %332 = vector.shape_cast %331 : vector<1x8x128xf32> to vector<8x128xf32>
    %333 = tpu.concatenate %318, %320, %322, %324, %326, %328, %330, %332 in 0 : vector<8x128xf32>, vector<8x128xf32>, vector<8x128xf32>, vector<8x128xf32>, vector<8x128xf32>, vector<8x128xf32>, vector<8x128xf32>, vector<8x128xf32> -> vector<64x128xf32>
    %334 = arith.truncf %333 : vector<64x128xf32> to vector<64x128xbf16>
    %c0_120 = arith.constant 0 : index
    %c0_121 = arith.constant 0 : index
    %335 = vector.load %arg8[%c0_120, %c0_121] : memref<128x128xbf16, #tpu.memory_space<vmem>>, vector<128x128xbf16>
    %cst_122 = arith.constant dense<0.000000e+00> : vector<64x128xf32>
    %336 = tpu.matmul %316, %335, %cst_122 {dimension_numbers = #tpu.dot_dimension_numbers<[1], [0], [0], [1], [0, 0, 1, 1], [], []>} : vector<64x128xbf16>, vector<128x128xbf16>, vector<64x128xf32> -> vector<64x128xf32>
    %c0_123 = arith.constant 0 : index
    %c0_124 = arith.constant 0 : index
    %337 = vector.load %arg9[%c0_123, %c0_124] : memref<128x128xbf16, #tpu.memory_space<vmem>>, vector<128x128xbf16>
    %cst_125 = arith.constant dense<0.000000e+00> : vector<64x128xf32>
    %338 = tpu.matmul %334, %337, %cst_125 {dimension_numbers = #tpu.dot_dimension_numbers<[1], [0], [0], [1], [0, 0, 1, 1], [], []>} : vector<64x128xbf16>, vector<128x128xbf16>, vector<64x128xf32> -> vector<64x128xf32>
    %339 = arith.addf %336, %338 : vector<64x128xf32>
    %c0_126 = arith.constant 0 : index
    %c0_127 = arith.constant 0 : index
    %340 = vector.load %arg10[%c0_126, %c0_127] : memref<1x128xf32, #tpu.memory_space<vmem>>, vector<1x128xf32>
    %341 = vector.broadcast %340 : vector<1x128xf32> to vector<64x128xf32>
    %342 = arith.addf %339, %341 : vector<64x128xf32>
    %cst_128 = arith.constant dense<0xFF800000> : vector<64xf32>
    %343 = vector.multi_reduction <maximumf>, %342, %cst_128 [1] : vector<64x128xf32> to vector<64xf32>
    %344 = vector.shape_cast %343 : vector<64xf32> to vector<64x1xf32>
    %345 = vector.broadcast %344 : vector<64x1xf32> to vector<64x128xf32>
    %346 = arith.subf %342, %345 : vector<64x128xf32>
    %347 = math.exp %346 : vector<64x128xf32>
    %cst_129 = arith.constant dense<0.000000e+00> : vector<64xf32>
    %348 = vector.multi_reduction <add>, %347, %cst_129 [1] : vector<64x128xf32> to vector<64xf32>
    %349 = vector.shape_cast %348 : vector<64xf32> to vector<64x1xf32>
    %350 = math.log %349 : vector<64x1xf32>
    %351 = arith.addf %344, %350 : vector<64x1xf32>
    %352 = vector.broadcast %351 : vector<64x1xf32> to vector<64x128xf32>
    %353 = arith.subf %342, %352 : vector<64x128xf32>
    %c0_130 = arith.constant 0 : index
    %c0_131 = arith.constant 0 : index
    %354 = vector.load %arg11[%c0_130, %c0_131] : memref<64x128xf32, #tpu.memory_space<vmem>>, vector<64x128xf32>
    tpu.vector_store %arg11[%c0_130, %c0_131], %353 {strides = array<i32>} : memref<64x128xf32, #tpu.memory_space<vmem>>, vector<64x128xf32>,
    return
  }
  func.func @transform_0(%arg0: i32) -> (i32, i32) {
    %c0_i32 = arith.constant 0 : i32
    %c0_i32_0 = arith.constant 0 : i32
    %c0_i32_1 = arith.constant 0 : i32
    return %c0_i32, %c0_i32_0 : i32, i32
  }
  func.func @transform_1(%arg0: i32) -> (i32, i32) {
    %c0_i32 = arith.constant 0 : i32
    %c0_i32_0 = arith.constant 0 : i32
    %c0_i32_1 = arith.constant 0 : i32
    return %c0_i32, %c0_i32_0 : i32, i32
  }
  func.func @transform_2(%arg0: i32) -> (i32, i32) {
    %c0_i32 = arith.constant 0 : i32
    %c0_i32_0 = arith.constant 0 : i32
    %c0_i32_1 = arith.constant 0 : i32
    return %c0_i32, %c0_i32_0 : i32, i32
  }
  func.func @transform_3(%arg0: i32) -> (i32, i32) {
    %c0_i32 = arith.constant 0 : i32
    %c0_i32_0 = arith.constant 0 : i32
    %c0_i32_1 = arith.constant 0 : i32
    return %c0_i32, %c0_i32_0 : i32, i32
  }
  func.func @transform_4(%arg0: i32) -> (i32, i32) {
    %c0_i32 = arith.constant 0 : i32
    %c0_i32_0 = arith.constant 0 : i32
    %c0_i32_1 = arith.constant 0 : i32
    return %c0_i32, %c0_i32_0 : i32, i32
  }
  func.func @transform_5(%arg0: i32) -> (i32, i32) {
    %c0_i32 = arith.constant 0 : i32
    %c0_i32_0 = arith.constant 0 : i32
    %c0_i32_1 = arith.constant 0 : i32
    return %c0_i32, %c0_i32_0 : i32, i32
  }
  func.func @transform_6(%arg0: i32) -> (i32, i32) {
    %c0_i32 = arith.constant 0 : i32
    %c0_i32_0 = arith.constant 0 : i32
    %c0_i32_1 = arith.constant 0 : i32
    return %c0_i32, %c0_i32_0 : i32, i32
  }
  func.func @transform_7(%arg0: i32) -> (i32, i32) {
    %c0_i32 = arith.constant 0 : i32
    %c0_i32_0 = arith.constant 0 : i32
    %c0_i32_1 = arith.constant 0 : i32
    return %c0_i32, %c0_i32_0 : i32, i32
  }
  func.func @transform_8(%arg0: i32) -> (i32, i32) {
    %c0_i32 = arith.constant 0 : i32
    %c0_i32_0 = arith.constant 0 : i32
    %c0_i32_1 = arith.constant 0 : i32
    return %c0_i32, %c0_i32_0 : i32, i32
  }
  func.func @transform_9(%arg0: i32) -> (i32, i32) {
    %c0_i32 = arith.constant 0 : i32
    %c0_i32_0 = arith.constant 0 : i32
    %c0_i32_1 = arith.constant 0 : i32
    return %c0_i32, %c0_i32_0 : i32, i32
  }
  func.func @transform_10(%arg0: i32) -> (i32, i32) {
    %c0_i32 = arith.constant 0 : i32
    %c0_i32_0 = arith.constant 0 : i32
    %c0_i32_1 = arith.constant 0 : i32
    return %c0_i32, %c0_i32_0 : i32, i32
  }
}

</mosaic_0001>

<llo_original>
// kernel: speech_to_text_forward.1
$region0: #{speech_to_text_forward.1}
  #allocation0 [shape = 'u32[]', space=smem, size = 0x4, offset = 0x4, fixed_abs, tag = 'smem constant byte address 0x4 - core index']
  #allocation1 [shape = 'u32[72,128]{1,0:T(1,128)}', space=vmem, size = 0x9000, scoped, tag = 'internal scratch']
  #allocation2 [shape = 'f32[8,8,512]{2,1,0:T(8,128)}', space=vmem, size = 0x20000, scoped, tag = 'scratch operand']
  #allocation3 [shape = 'f32[8,8,128]{2,1,0:T(8,128)}', space=vmem, size = 0x8000, scoped, tag = 'scratch operand']
  %s0 = inlined_call_operand.vmem [shape: bf16[64,32], index: 0, kind: input, shape index: {}]
  %s1 = inlined_call_operand.vmem [shape: bf16[64,32], index: 1, kind: input, shape index: {}]
  %s2 = inlined_call_operand.vmem [shape: bf16[32,128], index: 2, kind: input, shape index: {}]
  %s3 = inlined_call_operand.vmem [shape: bf16[32,128], index: 3, kind: input, shape index: {}]
  %s4 = inlined_call_operand.vmem [shape: bf16[128,512], index: 4, kind: input, shape index: {}]
  %s5 = inlined_call_operand.vmem [shape: f32[1,128], index: 5, kind: input, shape index: {}]
  %s6 = inlined_call_operand.vmem [shape: f32[1,128], index: 6, kind: input, shape index: {}]
  %s7 = inlined_call_operand.vmem [shape: bf16[128,128], index: 7, kind: input, shape index: {}]
  %s8 = inlined_call_operand.vmem [shape: bf16[128,128], index: 8, kind: input, shape index: {}]
  %s9 = inlined_call_operand.vmem [shape: f32[1,128], index: 9, kind: input, shape index: {}]
  %s10 = inlined_call_operand.vmem [shape: f32[64,128], index: 10, kind: output, shape index: {}]
  %s11 = sld [smem:[#allocation0]]
  $region50: #{speech_to_text_forward.1} parent=0
    _
  %s13 = ssub.s32 1, %s11
  %s14 = scalar_select 0, %s13, %s11
  // Predicated region
  $region2: #{speech_to_text_forward.1} parent=0 // pred_check
    _
  $region3: #{speech_to_text_forward.1} parent=0 // pred_check_branch
    %16 = sbr.rel (0) target = $region5
  $region4: #{speech_to_text_forward.1} parent=0 // pred_region
    _
  $region5: #{speech_to_text_forward.1} parent=0 // pred_fallthru
    _
  // Predicated region
  $region6: #{speech_to_text_forward.1} parent=0 // pred_check
    _
  $region7: #{speech_to_text_forward.1} parent=0 // pred_check_branch
    %18 = sbr.rel (0) target = $region9
  $region8: #{speech_to_text_forward.1} parent=0 // pred_region
    _
  $region9: #{speech_to_text_forward.1} parent=0 // pred_fallthru
    _
  // Predicated region
  $region10: #{speech_to_text_forward.1} parent=0 // pred_check
    _
  $region11: #{speech_to_text_forward.1} parent=0 // pred_check_branch
    %20 = sbr.rel (0) target = $region13
  $region12: #{speech_to_text_forward.1} parent=0 // pred_region
    _
  $region13: #{speech_to_text_forward.1} parent=0 // pred_fallthru
    _
  // Predicated region
  $region14: #{speech_to_text_forward.1} parent=0 // pred_check
    _
  $region15: #{speech_to_text_forward.1} parent=0 // pred_check_branch
    %22 = sbr.rel (0) target = $region17
  $region16: #{speech_to_text_forward.1} parent=0 // pred_region
    _
  $region17: #{speech_to_text_forward.1} parent=0 // pred_fallthru
    _
  // Predicated region
  $region18: #{speech_to_text_forward.1} parent=0 // pred_check
    _
  $region19: #{speech_to_text_forward.1} parent=0 // pred_check_branch
    %24 = sbr.rel (0) target = $region21
  $region20: #{speech_to_text_forward.1} parent=0 // pred_region
    _
  $region21: #{speech_to_text_forward.1} parent=0 // pred_fallthru
    _
  // Predicated region
  $region22: #{speech_to_text_forward.1} parent=0 // pred_check
    _
  $region23: #{speech_to_text_forward.1} parent=0 // pred_check_branch
    %26 = sbr.rel (0) target = $region25
  $region24: #{speech_to_text_forward.1} parent=0 // pred_region
    _
  $region25: #{speech_to_text_forward.1} parent=0 // pred_fallthru
    _
  // Predicated region
  $region26: #{speech_to_text_forward.1} parent=0 // pred_check
    _
  $region27: #{speech_to_text_forward.1} parent=0 // pred_check_branch
    %28 = sbr.rel (0) target = $region29
  $region28: #{speech_to_text_forward.1} parent=0 // pred_region
    _
  $region29: #{speech_to_text_forward.1} parent=0 // pred_fallthru
    _
  // Predicated region
  $region30: #{speech_to_text_forward.1} parent=0 // pred_check
    _
  $region31: #{speech_to_text_forward.1} parent=0 // pred_check_branch
    %30 = sbr.rel (0) target = $region33
  $region32: #{speech_to_text_forward.1} parent=0 // pred_region
    _
  $region33: #{speech_to_text_forward.1} parent=0 // pred_fallthru
    _
  // Predicated region
  $region34: #{speech_to_text_forward.1} parent=0 // pred_check
    _
  $region35: #{speech_to_text_forward.1} parent=0 // pred_check_branch
    %32 = sbr.rel (0) target = $region37
  $region36: #{speech_to_text_forward.1} parent=0 // pred_region
    _
  $region37: #{speech_to_text_forward.1} parent=0 // pred_fallthru
    _
  // Predicated region
  $region38: #{speech_to_text_forward.1} parent=0 // pred_check
    _
  $region39: #{speech_to_text_forward.1} parent=0 // pred_check_branch
    %34 = sbr.rel (0) target = $region41
  $region40: #{speech_to_text_forward.1} parent=0 // pred_region
    _
  $region41: #{speech_to_text_forward.1} parent=0 // pred_fallthru
    _
  %v36 = vld [vmem:[%s0] sm:$0xf]
  %v37 = vld [vmem:[%s0 + $0x4] sm:$0xf]
  %v38 = vld [vmem:[%s0 + $0x8] sm:$0xf]
  %v39 = vld [vmem:[%s0 + $0xc] sm:$0xf]
  %v40 = vld [vmem:[%s0 + $0x10] sm:$0xf]
  %v41 = vld [vmem:[%s0 + $0x14] sm:$0xf]
  %v42 = vld [vmem:[%s0 + $0x18] sm:$0xf]
  %v43 = vld [vmem:[%s0 + $0x1c] sm:$0xf]
  %v44 = vld [vmem:[%s2] sm:$0xf]
  %v45 = vld [vmem:[%s2 + $0x4] sm:$0xf]
  %v46 = vld [vmem:[%s2 + $0x8] sm:$0xf]
  %v47 = vld [vmem:[%s2 + $0xc] sm:$0xf]
  %v48 = vld [vmem:[%s5] sm:$0x1]
  %v50 = vperm.slane %v48, 0
  %v60 = vunpack.c.l.b16 %v36
  %v61 = vunpack.c.l.b16 %v37
  %v62 = vunpack.c.l.b16 %v38
  %v63 = vunpack.c.l.b16 %v39
  %v64 = vunpack.c.l.b16 %v40
  %v65 = vunpack.c.l.b16 %v41
  %v66 = vunpack.c.l.b16 %v42
  %v67 = vunpack.c.l.b16 %v43
  %v68 = vpack.c.b16 %v61, %v60
  %v69 = vpack.c.b16 %v63, %v62
  %v70 = vpack.c.b16 %v65, %v64
  %v71 = vpack.c.b16 %v67, %v66
  %v76 = vunpack.c.l.b16 %v44
  %v77 = vunpack.c.l.b16 %v45
  %v78 = vunpack.c.l.b16 %v46
  %v79 = vunpack.c.l.b16 %v47
  %v80 = vpack.c.b16 %v77, %v76
  %v81 = vpack.c.b16 %v79, %v78
  %vm84 = vcmask 261120
  %v86 = vsel %vm84, %v68, 0
  %v89 = vsel %vm84, %v69, 0
  %v92 = vsel %vm84, %v70, 0
  %v95 = vsel %vm84, %v71, 0
  %97 = vmatpush.bf16.msra.mxu0 0
  %98 = vmatpush.bf16.msra.mxu0 0
  %99 = vmatpush.bf16.msra.mxu0 0
  %100 = vmatpush.bf16.msra.mxu0 0
  %101 = vmatpush.bf16.msra.mxu0 0
  %102 = vmatpush.bf16.msra.mxu0 0
  %103 = vmatpush.bf16.msra.mxu0 %v81
  %104 = vmatpush.bf16.msra.mxu0 %v80
  %105 = vmatmul.bf16.gmra.mxu0 %v86
  %v106 = vpop.f32.mrf.mxu0
  %v107 = vadd.f32 %v50, %v106
  %v108 = vpop.f32.mrf.mxu0
  %v109 = vadd.f32 %v50, %v108
  %110 = vmatmul.bf16.gmra.mxu0 %v89
  %v111 = vpop.f32.mrf.mxu0
  %v112 = vadd.f32 %v50, %v111
  %v113 = vpop.f32.mrf.mxu0
  %v114 = vadd.f32 %v50, %v113
  %115 = vmatmul.bf16.gmra.mxu0 %v92
  %v116 = vpop.f32.mrf.mxu0
  %v117 = vadd.f32 %v50, %v116
  %v118 = vpop.f32.mrf.mxu0
  %v119 = vadd.f32 %v50, %v118
  %120 = vmatmul.bf16.gmra.mxu0 %v95
  %v121 = vpop.f32.mrf.mxu0
  %v122 = vadd.f32 %v50, %v121
  %v123 = vpop.f32.mrf.mxu0
  %v124 = vadd.f32 %v50, %v123
  %125 = vdwg.mxu0
  %v126 = vld [vmem:[%s1] sm:$0xf]
  %v127 = vld [vmem:[%s1 + $0x4] sm:$0xf]
  %v128 = vld [vmem:[%s1 + $0x8] sm:$0xf]
  %v129 = vld [vmem:[%s1 + $0xc] sm:$0xf]
  %v130 = vld [vmem:[%s1 + $0x10] sm:$0xf]
  %v131 = vld [vmem:[%s1 + $0x14] sm:$0xf]
  %v132 = vld [vmem:[%s1 + $0x18] sm:$0xf]
  %v133 = vld [vmem:[%s1 + $0x1c] sm:$0xf]
  %v134 = vld [vmem:[%s3] sm:$0xf]
  %v135 = vld [vmem:[%s3 + $0x4] sm:$0xf]
  %v136 = vld [vmem:[%s3 + $0x8] sm:$0xf]
  %v137 = vld [vmem:[%s3 + $0xc] sm:$0xf]
  %v138 = vld [vmem:[%s6] sm:$0x1]
  %v140 = vperm.slane %v138, 0
  %v150 = vunpack.c.l.b16 %v126
  %v151 = vunpack.c.l.b16 %v127
  %v152 = vunpack.c.l.b16 %v128
  %v153 = vunpack.c.l.b16 %v129
  %v154 = vunpack.c.l.b16 %v130
  %v155 = vunpack.c.l.b16 %v131
  %v156 = vunpack.c.l.b16 %v132
  %v157 = vunpack.c.l.b16 %v133
  %v158 = vpack.c.b16 %v151, %v150
  %v159 = vpack.c.b16 %v153, %v152
  %v160 = vpack.c.b16 %v155, %v154
  %v161 = vpack.c.b16 %v157, %v156
  %v166 = vunpack.c.l.b16 %v134
  %v167 = vunpack.c.l.b16 %v135
  %v168 = vunpack.c.l.b16 %v136
  %v169 = vunpack.c.l.b16 %v137
  %v170 = vpack.c.b16 %v167, %v166
  %v171 = vpack.c.b16 %v169, %v168
  %v175 = vsel %vm84, %v158, 0
  %v178 = vsel %vm84, %v159, 0
  %v181 = vsel %vm84, %v160, 0
  %v184 = vsel %vm84, %v161, 0
  %186 = vmatpush.bf16.msra.mxu0 0
  %187 = vmatpush.bf16.msra.mxu0 0
  %188 = vmatpush.bf16.msra.mxu0 0
  %189 = vmatpush.bf16.msra.mxu0 0
  %190 = vmatpush.bf16.msra.mxu0 0
  %191 = vmatpush.bf16.msra.mxu0 0
  %192 = vmatpush.bf16.msra.mxu0 %v171
  %193 = vmatpush.bf16.msra.mxu0 %v170
  %194 = vmatmul.bf16.gmra.mxu0 %v175
  %v195 = vpop.f32.mrf.mxu0
  %v196 = vadd.f32 %v140, %v195
  %v197 = vpop.f32.mrf.mxu0
  %v198 = vadd.f32 %v140, %v197
  %199 = vmatmul.bf16.gmra.mxu0 %v178
  %v200 = vpop.f32.mrf.mxu0
  %v201 = vadd.f32 %v140, %v200
  %v202 = vpop.f32.mrf.mxu0
  %v203 = vadd.f32 %v140, %v202
  %204 = vmatmul.bf16.gmra.mxu0 %v181
  %v205 = vpop.f32.mrf.mxu0
  %v206 = vadd.f32 %v140, %v205
  %v207 = vpop.f32.mrf.mxu0
  %v208 = vadd.f32 %v140, %v207
  %209 = vmatmul.bf16.gmra.mxu0 %v184
  %v210 = vpop.f32.mrf.mxu0
  %v211 = vadd.f32 %v140, %v210
  %v212 = vpop.f32.mrf.mxu0
  %v213 = vadd.f32 %v140, %v212
  %214 = vdwg.mxu0
  %215 = vst [vmem:[#allocation2] sm:$0xff] 0.0
  %216 = vst [vmem:[#allocation2 + $0x8] sm:$0xff] 0.0
  %217 = vst [vmem:[#allocation2 + $0x10] sm:$0xff] 0.0
  %218 = vst [vmem:[#allocation2 + $0x18] sm:$0xff] 0.0
  %219 = vst [vmem:[#allocation2 + $0x20] sm:$0xff] 0.0
  %220 = vst [vmem:[#allocation2 + $0x28] sm:$0xff] 0.0
  %221 = vst [vmem:[#allocation2 + $0x30] sm:$0xff] 0.0
  %222 = vst [vmem:[#allocation2 + $0x38] sm:$0xff] 0.0
  %223 = vst [vmem:[#allocation2 + $0x40] sm:$0xff] 0.0
  %224 = vst [vmem:[#allocation2 + $0x48] sm:$0xff] 0.0
  %225 = vst [vmem:[#allocation2 + $0x50] sm:$0xff] 0.0
  %226 = vst [vmem:[#allocation2 + $0x58] sm:$0xff] 0.0
  %227 = vst [vmem:[#allocation2 + $0x60] sm:$0xff] 0.0
  %228 = vst [vmem:[#allocation2 + $0x68] sm:$0xff] 0.0
  %229 = vst [vmem:[#allocation2 + $0x70] sm:$0xff] 0.0
  %230 = vst [vmem:[#allocation2 + $0x78] sm:$0xff] 0.0
  %231 = vst [vmem:[#allocation2 + $0x80] sm:$0xff] 0.0
  %232 = vst [vmem:[#allocation2 + $0x88] sm:$0xff] 0.0
  %233 = vst [vmem:[#allocation2 + $0x90] sm:$0xff] 0.0
  %234 = vst [vmem:[#allocation2 + $0x98] sm:$0xff] 0.0
  %235 = vst [vmem:[#allocation2 + $0xa0] sm:$0xff] 0.0
  %236 = vst [vmem:[#allocation2 + $0xa8] sm:$0xff] 0.0
  %237 = vst [vmem:[#allocation2 + $0xb0] sm:$0xff] 0.0
  %238 = vst [vmem:[#allocation2 + $0xb8] sm:$0xff] 0.0
  %239 = vst [vmem:[#allocation2 + $0xc0] sm:$0xff] 0.0
  %240 = vst [vmem:[#allocation2 + $0xc8] sm:$0xff] 0.0
  %241 = vst [vmem:[#allocation2 + $0xd0] sm:$0xff] 0.0
  %242 = vst [vmem:[#allocation2 + $0xd8] sm:$0xff] 0.0
  %243 = vst [vmem:[#allocation2 + $0xe0] sm:$0xff] 0.0
  %244 = vst [vmem:[#allocation2 + $0xe8] sm:$0xff] 0.0
  %245 = vst [vmem:[#allocation2 + $0xf0] sm:$0xff] 0.0
  %246 = vst [vmem:[#allocation2 + $0xf8] sm:$0xff] 0.0
  %247 = vst.msk [vmem:[#allocation2] sm:$0xff] %vm84, %v107
  %248 = vst.msk [vmem:[#allocation2 + $0x20] sm:$0xff] %vm84, %v109
  %249 = vst.msk [vmem:[#allocation2 + $0x40] sm:$0xff] %vm84, %v112
  %250 = vst.msk [vmem:[#allocation2 + $0x60] sm:$0xff] %vm84, %v114
  %251 = vst.msk [vmem:[#allocation2 + $0x80] sm:$0xff] %vm84, %v117
  %252 = vst.msk [vmem:[#allocation2 + $0xa0] sm:$0xff] %vm84, %v119
  %253 = vst.msk [vmem:[#allocation2 + $0xc0] sm:$0xff] %vm84, %v122
  %254 = vst.msk [vmem:[#allocation2 + $0xe0] sm:$0xff] %vm84, %v124
  %263 = vrot.lane.b32.xlu0 %v196, 32
  %v264 = vpop.permute.xlu0 %263
  %265 = vrot.lane.b32.xlu0 %v198, 32
  %v266 = vpop.permute.xlu0 %265
  %267 = vrot.lane.b32.xlu0 %v201, 32
  %v268 = vpop.permute.xlu0 %267
  %269 = vrot.lane.b32.xlu0 %v203, 32
  %v270 = vpop.permute.xlu0 %269
  %271 = vrot.lane.b32.xlu0 %v206, 32
  %v272 = vpop.permute.xlu0 %271
  %273 = vrot.lane.b32.xlu0 %v208, 32
  %v274 = vpop.permute.xlu0 %273
  %275 = vrot.lane.b32.xlu0 %v211, 32
  %v276 = vpop.permute.xlu0 %275
  %277 = vrot.lane.b32.xlu0 %v213, 32
  %v278 = vpop.permute.xlu0 %277
  %vm287 = vcmask 523520
  %288 = vst.msk [vmem:[#allocation2] sm:$0xff] %vm287, %v264
  %289 = vst.msk [vmem:[#allocation2 + $0x20] sm:$0xff] %vm287, %v266
  %290 = vst.msk [vmem:[#allocation2 + $0x40] sm:$0xff] %vm287, %v268
  %291 = vst.msk [vmem:[#allocation2 + $0x60] sm:$0xff] %vm287, %v270
  %292 = vst.msk [vmem:[#allocation2 + $0x80] sm:$0xff] %vm287, %v272
  %293 = vst.msk [vmem:[#allocation2 + $0xa0] sm:$0xff] %vm287, %v274
  %294 = vst.msk [vmem:[#allocation2 + $0xc0] sm:$0xff] %vm287, %v276
  %295 = vst.msk [vmem:[#allocation2 + $0xe0] sm:$0xff] %vm287, %v278
  %304 = vrot.lane.b32.xlu0 %v107, 96
  %v305 = vpop.permute.xlu0 %304
  %306 = vrot.lane.b32.xlu0 %v109, 96
  %v307 = vpop.permute.xlu0 %306
  %308 = vrot.lane.b32.xlu0 %v112, 96
  %v309 = vpop.permute.xlu0 %308
  %310 = vrot.lane.b32.xlu0 %v114, 96
  %v311 = vpop.permute.xlu0 %310
  %312 = vrot.lane.b32.xlu0 %v117, 96
  %v313 = vpop.permute.xlu0 %312
  %314 = vrot.lane.b32.xlu0 %v119, 96
  %v315 = vpop.permute.xlu0 %314
  %316 = vrot.lane.b32.xlu0 %v122, 96
  %v317 = vpop.permute.xlu0 %316
  %318 = vrot.lane.b32.xlu0 %v124, 96
  %v319 = vpop.permute.xlu0 %318
  %328 = vst.msk [vmem:[#allocation2 + $0x8] sm:$0xff] %vm84, %v305
  %329 = vst.msk [vmem:[#allocation2 + $0x28] sm:$0xff] %vm84, %v307
  %330 = vst.msk [vmem:[#allocation2 + $0x48] sm:$0xff] %vm84, %v309
  %331 = vst.msk [vmem:[#allocation2 + $0x68] sm:$0xff] %vm84, %v311
  %332 = vst.msk [vmem:[#allocation2 + $0x88] sm:$0xff] %vm84, %v313
  %333 = vst.msk [vmem:[#allocation2 + $0xa8] sm:$0xff] %vm84, %v315
  %334 = vst.msk [vmem:[#allocation2 + $0xc8] sm:$0xff] %vm84, %v317
  %335 = vst.msk [vmem:[#allocation2 + $0xe8] sm:$0xff] %vm84, %v319
  %336 = vst.msk [vmem:[#allocation2 + $0x8] sm:$0xff] %vm287, %v196
  %337 = vst.msk [vmem:[#allocation2 + $0x28] sm:$0xff] %vm287, %v198
  %338 = vst.msk [vmem:[#allocation2 + $0x48] sm:$0xff] %vm287, %v201
  %339 = vst.msk [vmem:[#allocation2 + $0x68] sm:$0xff] %vm287, %v203
  %340 = vst.msk [vmem:[#allocation2 + $0x88] sm:$0xff] %vm287, %v206
  %341 = vst.msk [vmem:[#allocation2 + $0xa8] sm:$0xff] %vm287, %v208
  %342 = vst.msk [vmem:[#allocation2 + $0xc8] sm:$0xff] %vm287, %v211
  %343 = vst.msk [vmem:[#allocation2 + $0xe8] sm:$0xff] %vm287, %v213
  %344 = vrot.lane.b32.xlu0 %v107, 64
  %v345 = vpop.permute.xlu0 %344
  %346 = vrot.lane.b32.xlu0 %v109, 64
  %v347 = vpop.permute.xlu0 %346
  %348 = vrot.lane.b32.xlu0 %v112, 64
  %v349 = vpop.permute.xlu0 %348
  %350 = vrot.lane.b32.xlu0 %v114, 64
  %v351 = vpop.permute.xlu0 %350
  %352 = vrot.lane.b32.xlu0 %v117, 64
  %v353 = vpop.permute.xlu0 %352
  %354 = vrot.lane.b32.xlu0 %v119, 64
  %v355 = vpop.permute.xlu0 %354
  %356 = vrot.lane.b32.xlu0 %v122, 64
  %v357 = vpop.permute.xlu0 %356
  %358 = vrot.lane.b32.xlu0 %v124, 64
  %v359 = vpop.permute.xlu0 %358
  %368 = vst.msk [vmem:[#allocation2 + $0x10] sm:$0xff] %vm84, %v345
  %369 = vst.msk [vmem:[#allocation2 + $0x30] sm:$0xff] %vm84, %v347
  %370 = vst.msk [vmem:[#allocation2 + $0x50] sm:$0xff] %vm84, %v349
  %371 = vst.msk [vmem:[#allocation2 + $0x70] sm:$0xff] %vm84, %v351
  %372 = vst.msk [vmem:[#allocation2 + $0x90] sm:$0xff] %vm84, %v353
  %373 = vst.msk [vmem:[#allocation2 + $0xb0] sm:$0xff] %vm84, %v355
  %374 = vst.msk [vmem:[#allocation2 + $0xd0] sm:$0xff] %vm84, %v357
  %375 = vst.msk [vmem:[#allocation2 + $0xf0] sm:$0xff] %vm84, %v359
  %376 = vrot.lane.b32.xlu0 %v196, 96
  %v377 = vpop.permute.xlu0 %376
  %378 = vrot.lane.b32.xlu0 %v198, 96
  %v379 = vpop.permute.xlu0 %378
  %380 = vrot.lane.b32.xlu0 %v201, 96
  %v381 = vpop.permute.xlu0 %380
  %382 = vrot.lane.b32.xlu0 %v203, 96
  %v383 = vpop.permute.xlu0 %382
  %384 = vrot.lane.b32.xlu0 %v206, 96
  %v385 = vpop.permute.xlu0 %384
  %386 = vrot.lane.b32.xlu0 %v208, 96
  %v387 = vpop.permute.xlu0 %386
  %388 = vrot.lane.b32.xlu0 %v211, 96
  %v389 = vpop.permute.xlu0 %388
  %390 = vrot.lane.b32.xlu0 %v213, 96
  %v391 = vpop.permute.xlu0 %390
  %400 = vst.msk [vmem:[#allocation2 + $0x10] sm:$0xff] %vm287, %v377
  %401 = vst.msk [vmem:[#allocation2 + $0x30] sm:$0xff] %vm287, %v379
  %402 = vst.msk [vmem:[#allocation2 + $0x50] sm:$0xff] %vm287, %v381
  %403 = vst.msk [vmem:[#allocation2 + $0x70] sm:$0xff] %vm287, %v383
  %404 = vst.msk [vmem:[#allocation2 + $0x90] sm:$0xff] %vm287, %v385
  %405 = vst.msk [vmem:[#allocation2 + $0xb0] sm:$0xff] %vm287, %v387
  %406 = vst.msk [vmem:[#allocation2 + $0xd0] sm:$0xff] %vm287, %v389
  %407 = vst.msk [vmem:[#allocation2 + $0xf0] sm:$0xff] %vm287, %v391
  %408 = vrot.lane.b32.xlu0 %v107, 32
  %v409 = vpop.permute.xlu0 %408
  %410 = vrot.lane.b32.xlu0 %v109, 32
  %v411 = vpop.permute.xlu0 %410
  %412 = vrot.lane.b32.xlu0 %v112, 32
  %v413 = vpop.permute.xlu0 %412
  %414 = vrot.lane.b32.xlu0 %v114, 32
  %v415 = vpop.permute.xlu0 %414
  %416 = vrot.lane.b32.xlu0 %v117, 32
  %v417 = vpop.permute.xlu0 %416
  %418 = vrot.lane.b32.xlu0 %v119, 32
  %v419 = vpop.permute.xlu0 %418
  %420 = vrot.lane.b32.xlu0 %v122, 32
  %v421 = vpop.permute.xlu0 %420
  %422 = vrot.lane.b32.xlu0 %v124, 32
  %v423 = vpop.permute.xlu0 %422
  %432 = vst.msk [vmem:[#allocation2 + $0x18] sm:$0xff] %vm84, %v409
  %433 = vst.msk [vmem:[#allocation2 + $0x38] sm:$0xff] %vm84, %v411
  %434 = vst.msk [vmem:[#allocation2 + $0x58] sm:$0xff] %vm84, %v413
  %435 = vst.msk [vmem:[#allocation2 + $0x78] sm:$0xff] %vm84, %v415
  %436 = vst.msk [vmem:[#allocation2 + $0x98] sm:$0xff] %vm84, %v417
  %437 = vst.msk [vmem:[#allocation2 + $0xb8] sm:$0xff] %vm84, %v419
  %438 = vst.msk [vmem:[#allocation2 + $0xd8] sm:$0xff] %vm84, %v421
  %439 = vst.msk [vmem:[#allocation2 + $0xf8] sm:$0xff] %vm84, %v423
  %440 = vrot.lane.b32.xlu0 %v196, 64
  %v441 = vpop.permute.xlu0 %440
  %442 = vrot.lane.b32.xlu0 %v198, 64
  %v443 = vpop.permute.xlu0 %442
  %444 = vrot.lane.b32.xlu0 %v201, 64
  %v445 = vpop.permute.xlu0 %444
  %446 = vrot.lane.b32.xlu0 %v203, 64
  %v447 = vpop.permute.xlu0 %446
  %448 = vrot.lane.b32.xlu0 %v206, 64
  %v449 = vpop.permute.xlu0 %448
  %450 = vrot.lane.b32.xlu0 %v208, 64
  %v451 = vpop.permute.xlu0 %450
  %452 = vrot.lane.b32.xlu0 %v211, 64
  %v453 = vpop.permute.xlu0 %452
  %454 = vrot.lane.b32.xlu0 %v213, 64
  %v455 = vpop.permute.xlu0 %454
  %464 = vst.msk [vmem:[#allocation2 + $0x18] sm:$0xff] %vm287, %v441
  %465 = vst.msk [vmem:[#allocation2 + $0x38] sm:$0xff] %vm287, %v443
  %466 = vst.msk [vmem:[#allocation2 + $0x58] sm:$0xff] %vm287, %v445
  %467 = vst.msk [vmem:[#allocation2 + $0x78] sm:$0xff] %vm287, %v447
  %468 = vst.msk [vmem:[#allocation2 + $0x98] sm:$0xff] %vm287, %v449
  %469 = vst.msk [vmem:[#allocation2 + $0xb8] sm:$0xff] %vm287, %v451
  %470 = vst.msk [vmem:[#allocation2 + $0xd8] sm:$0xff] %vm287, %v453
  %471 = vst.msk [vmem:[#allocation2 + $0xf8] sm:$0xff] %vm287, %v455
  %v472 = vld [vmem:[%s4] sm:$0xff]
  %v473 = vld [vmem:[%s4 + $0x8] sm:$0xff]
  %v474 = vld [vmem:[%s4 + $0x10] sm:$0xff]
  %v475 = vld [vmem:[%s4 + $0x18] sm:$0xff]
  %v476 = vld [vmem:[%s4 + $0x20] sm:$0xff]
  %v477 = vld [vmem:[%s4 + $0x28] sm:$0xff]
  %v478 = vld [vmem:[%s4 + $0x30] sm:$0xff]
  %v479 = vld [vmem:[%s4 + $0x38] sm:$0xff]
  %v480 = vld [vmem:[%s4 + $0x40] sm:$0xff]
  %v481 = vld [vmem:[%s4 + $0x48] sm:$0xff]
  %v482 = vld [vmem:[%s4 + $0x50] sm:$0xff]
  %v483 = vld [vmem:[%s4 + $0x58] sm:$0xff]
  %v484 = vld [vmem:[%s4 + $0x60] sm:$0xff]
  %v485 = vld [vmem:[%s4 + $0x68] sm:$0xff]
  %v486 = vld [vmem:[%s4 + $0x70] sm:$0xff]
  %v487 = vld [vmem:[%s4 + $0x78] sm:$0xff]
  %v488 = vld [vmem:[%s4 + $0x80] sm:$0xff]
  %v489 = vld [vmem:[%s4 + $0x88] sm:$0xff]
  %v490 = vld [vmem:[%s4 + $0x90] sm:$0xff]
  %v491 = vld [vmem:[%s4 + $0x98] sm:$0xff]
  %v492 = vld [vmem:[%s4 + $0xa0] sm:$0xff]
  %v493 = vld [vmem:[%s4 + $0xa8] sm:$0xff]
  %v494 = vld [vmem:[%s4 + $0xb0] sm:$0xff]
  %v495 = vld [vmem:[%s4 + $0xb8] sm:$0xff]
  %v496 = vld [vmem:[%s4 + $0xc0] sm:$0xff]
  %v497 = vld [vmem:[%s4 + $0xc8] sm:$0xff]
  %v498 = vld [vmem:[%s4 + $0xd0] sm:$0xff]
  %v499 = vld [vmem:[%s4 + $0xd8] sm:$0xff]
  %v500 = vld [vmem:[%s4 + $0xe0] sm:$0xff]
  %v501 = vld [vmem:[%s4 + $0xe8] sm:$0xff]
  %v502 = vld [vmem:[%s4 + $0xf0] sm:$0xff]
  %v503 = vld [vmem:[%s4 + $0xf8] sm:$0xff]
  %v504 = vld [vmem:[#allocation2] sm:$0xff]
  %v505 = vld [vmem:[#allocation2 + $0x8] sm:$0xff]
  %v506 = vld [vmem:[#allocation2 + $0x10] sm:$0xff]
  %v507 = vld [vmem:[#allocation2 + $0x18] sm:$0xff]
  %v540 = vunpack.c.l.b16 %v472
  %v541 = vunpack.c.h.b16 %v472
  %v542 = vunpack.c.l.b16 %v473
  %v543 = vunpack.c.h.b16 %v473
  %v544 = vunpack.c.l.b16 %v474
  %v545 = vunpack.c.h.b16 %v474
  %v546 = vunpack.c.l.b16 %v475
  %v547 = vunpack.c.h.b16 %v475
  %v548 = vunpack.c.l.b16 %v476
  %v549 = vunpack.c.h.b16 %v476
  %v550 = vunpack.c.l.b16 %v477
  %v551 = vunpack.c.h.b16 %v477
  %v552 = vunpack.c.l.b16 %v478
  %v553 = vunpack.c.h.b16 %v478
  %v554 = vunpack.c.l.b16 %v479
  %v555 = vunpack.c.h.b16 %v479
  %v556 = vunpack.c.l.b16 %v480
  %v557 = vunpack.c.h.b16 %v480
  %v558 = vunpack.c.l.b16 %v481
  %v559 = vunpack.c.h.b16 %v481
  %v560 = vunpack.c.l.b16 %v482
  %v561 = vunpack.c.h.b16 %v482
  %v562 = vunpack.c.l.b16 %v483
  %v563 = vunpack.c.h.b16 %v483
  %v564 = vunpack.c.l.b16 %v484
  %v565 = vunpack.c.h.b16 %v484
  %v566 = vunpack.c.l.b16 %v485
  %v567 = vunpack.c.h.b16 %v485
  %v568 = vunpack.c.l.b16 %v486
  %v569 = vunpack.c.h.b16 %v486
  %v570 = vunpack.c.l.b16 %v487
  %v571 = vunpack.c.h.b16 %v487
  %v572 = vunpack.c.l.b16 %v488
  %v573 = vunpack.c.h.b16 %v488
  %v574 = vunpack.c.l.b16 %v489
  %v575 = vunpack.c.h.b16 %v489
  %v576 = vunpack.c.l.b16 %v490
  %v577 = vunpack.c.h.b16 %v490
  %v578 = vunpack.c.l.b16 %v491
  %v579 = vunpack.c.h.b16 %v491
  %v580 = vunpack.c.l.b16 %v492
  %v581 = vunpack.c.h.b16 %v492
  %v582 = vunpack.c.l.b16 %v493
  %v583 = vunpack.c.h.b16 %v493
  %v584 = vunpack.c.l.b16 %v494
  %v585 = vunpack.c.h.b16 %v494
  %v586 = vunpack.c.l.b16 %v495
  %v587 = vunpack.c.h.b16 %v495
  %v588 = vunpack.c.l.b16 %v496
  %v589 = vunpack.c.h.b16 %v496
  %v590 = vunpack.c.l.b16 %v497
  %v591 = vunpack.c.h.b16 %v497
  %v592 = vunpack.c.l.b16 %v498
  %v593 = vunpack.c.h.b16 %v498
  %v594 = vunpack.c.l.b16 %v499
  %v595 = vunpack.c.h.b16 %v499
  %v596 = vunpack.c.l.b16 %v500
  %v597 = vunpack.c.h.b16 %v500
  %v598 = vunpack.c.l.b16 %v501
  %v599 = vunpack.c.h.b16 %v501
  %v600 = vunpack.c.l.b16 %v502
  %v601 = vunpack.c.h.b16 %v502
  %v602 = vunpack.c.l.b16 %v503
  %v603 = vunpack.c.h.b16 %v503
  %v604 = vpack.c.b16 %v544, %v540
  %v605 = vpack.c.b16 %v545, %v541
  %v606 = vpack.c.b16 %v546, %v542
  %v607 = vpack.c.b16 %v547, %v543
  %v608 = vpack.c.b16 %v552, %v548
  %v609 = vpack.c.b16 %v553, %v549
  %v610 = vpack.c.b16 %v554, %v550
  %v611 = vpack.c.b16 %v555, %v551
  %v612 = vpack.c.b16 %v560, %v556
  %v613 = vpack.c.b16 %v561, %v557
  %v614 = vpack.c.b16 %v562, %v558
  %v615 = vpack.c.b16 %v563, %v559
  %v616 = vpack.c.b16 %v568, %v564
  %v617 = vpack.c.b16 %v569, %v565
  %v618 = vpack.c.b16 %v570, %v566
  %v619 = vpack.c.b16 %v571, %v567
  %v620 = vpack.c.b16 %v576, %v572
  %v621 = vpack.c.b16 %v577, %v573
  %v622 = vpack.c.b16 %v578, %v574
  %v623 = vpack.c.b16 %v579, %v575
  %v624 = vpack.c.b16 %v584, %v580
  %v625 = vpack.c.b16 %v585, %v581
  %v626 = vpack.c.b16 %v586, %v582
  %v627 = vpack.c.b16 %v587, %v583
  %v628 = vpack.c.b16 %v592, %v588
  %v629 = vpack.c.b16 %v593, %v589
  %v630 = vpack.c.b16 %v594, %v590
  %v631 = vpack.c.b16 %v595, %v591
  %v632 = vpack.c.b16 %v600, %v596
  %v633 = vpack.c.b16 %v601, %v597
  %v634 = vpack.c.b16 %v602, %v598
  %v635 = vpack.c.b16 %v603, %v599
  %668 = vmatpush.bf16.msra.mxu0 %v632
  %669 = vmatpush.bf16.msra.mxu0 %v628
  %670 = vmatpush.bf16.msra.mxu0 %v624
  %671 = vmatpush.bf16.msra.mxu0 %v620
  %672 = vmatpush.bf16.msra.mxu0 %v616
  %673 = vmatpush.bf16.msra.mxu0 %v612
  %674 = vmatpush.bf16.msra.mxu0 %v608
  %675 = vmatpush.bf16.msra.mxu0 %v604
  %676 = vmatmul.bf16.gmra.mxu0 0
  %v677 = vpop.f32.mrf.mxu0
  %v678 = vadd.f32 0.0, %v677
  %v679 = vpop.f32.mrf.mxu0
  %680 = vdwg.mxu0
  %681 = vmatpush.bf16.msra.mxu0 %v633
  %682 = vmatpush.bf16.msra.mxu0 %v629
  %683 = vmatpush.bf16.msra.mxu0 %v625
  %684 = vmatpush.bf16.msra.mxu0 %v621
  %685 = vmatpush.bf16.msra.mxu0 %v617
  %686 = vmatpush.bf16.msra.mxu0 %v613
  %687 = vmatpush.bf16.msra.mxu0 %v609
  %688 = vmatpush.bf16.msra.mxu0 %v605
  %689 = vmatmul.bf16.gmra.mxu0 0
  %v690 = vpop.f32.mrf.mxu0
  %v691 = vadd.f32 0.0, %v690
  %v692 = vpop.f32.mrf.mxu0
  %693 = vdwg.mxu0
  %694 = vmatpush.bf16.msra.mxu0 %v634
  %695 = vmatpush.bf16.msra.mxu0 %v630
  %696 = vmatpush.bf16.msra.mxu0 %v626
  %697 = vmatpush.bf16.msra.mxu0 %v622
  %698 = vmatpush.bf16.msra.mxu0 %v618
  %699 = vmatpush.bf16.msra.mxu0 %v614
  %700 = vmatpush.bf16.msra.mxu0 %v610
  %701 = vmatpush.bf16.msra.mxu0 %v606
  %702 = vmatmul.bf16.gmra.mxu0 0
  %v703 = vpop.f32.mrf.mxu0
  %v704 = vadd.f32 0.0, %v703
  %v705 = vpop.f32.mrf.mxu0
  %706 = vdwg.mxu0
  %707 = vmatpush.bf16.msra.mxu0 %v635
  %708 = vmatpush.bf16.msra.mxu0 %v631
  %709 = vmatpush.bf16.msra.mxu0 %v627
  %710 = vmatpush.bf16.msra.mxu0 %v623
  %711 = vmatpush.bf16.msra.mxu0 %v619
  %712 = vmatpush.bf16.msra.mxu0 %v615
  %713 = vmatpush.bf16.msra.mxu0 %v611
  %714 = vmatpush.bf16.msra.mxu0 %v607
  %715 = vmatmul.bf16.gmra.mxu0 0
  %v716 = vpop.f32.mrf.mxu0
  %v717 = vadd.f32 0.0, %v716
  %v718 = vpop.f32.mrf.mxu0
  %719 = vdwg.mxu0
  %v720 = vadd.f32 %v504, %v678
  %v721 = vadd.f32 %v505, %v691
  %v722 = vadd.f32 %v506, %v704
  %v723 = vadd.f32 %v507, %v717
  %v724 = vxor.u32 %v720, 2147483648
  %v725 = vmul.f32 %v724, 1.442695
  %v726 = vpow.pop %v725
  %v727 = vadd.f32 %v726, 1.0
  %v728 = vrcp.pop %v727
  %v729 = vmul.f32 %v727, %v728
  %v730 = vsub.f32 1.0, %v729
  %v731 = vmul.f32 %v728, %v730
  %v732 = vadd.f32 %v728, %v731
  %vm733 = vweird.f32 %v727
  %vm734 = vweird.f32 %v728
  %vm735 = vmor %vm733, %vm734
  %v736 = vsel %vm735, %v728, %v732
  %v737 = vand.u32 2147483647, %v727
  %vm738 = vcmp.eq.f32.partialorder %v737, 8.507059e+37
  %v739 = vand.u32 %v727, 2147483648
  %v740 = vor.u32 1.1754944e-38, %v739
  %v741 = vsel %vm738, %v740, %v736
  %v742 = vmul.f32 1.0, %v741
  %v743 = vxor.u32 %v721, 2147483648
  %v744 = vmul.f32 %v743, 1.442695
  %v745 = vpow.pop %v744
  %v746 = vadd.f32 %v745, 1.0
  %v747 = vrcp.pop %v746
  %v748 = vmul.f32 %v746, %v747
  %v749 = vsub.f32 1.0, %v748
  %v750 = vmul.f32 %v747, %v749
  %v751 = vadd.f32 %v747, %v750
  %vm752 = vweird.f32 %v746
  %vm753 = vweird.f32 %v747
  %vm754 = vmor %vm752, %vm753
  %v755 = vsel %vm754, %v747, %v751
  %v756 = vand.u32 2147483647, %v746
  %vm757 = vcmp.eq.f32.partialorder %v756, 8.507059e+37
  %v758 = vand.u32 %v746, 2147483648
  %v759 = vor.u32 1.1754944e-38, %v758
  %v760 = vsel %vm757, %v759, %v755
  %v761 = vmul.f32 1.0, %v760
  %v762 = vtanh.pop %v722
  %v763 = vxor.u32 %v723, 2147483648
  %v764 = vmul.f32 %v763, 1.442695
  %v765 = vpow.pop %v764
  %v766 = vadd.f32 %v765, 1.0
  %v767 = vrcp.pop %v766
  %v768 = vmul.f32 %v766, %v767
  %v769 = vsub.f32 1.0, %v768
  %v770 = vmul.f32 %v767, %v769
  %v771 = vadd.f32 %v767, %v770
  %vm772 = vweird.f32 %v766
  %vm773 = vweird.f32 %v767
  %vm774 = vmor %vm772, %vm773
  %v775 = vsel %vm774, %v767, %v771
  %v776 = vand.u32 2147483647, %v766
  %vm777 = vcmp.eq.f32.partialorder %v776, 8.507059e+37
  %v778 = vand.u32 %v766, 2147483648
  %v779 = vor.u32 1.1754944e-38, %v778
  %v780 = vsel %vm777, %v779, %v775
  %v781 = vmul.f32 1.0, %v780
  %v782 = vmul.f32 %v761, 0.0
  %v783 = vmul.f32 %v742, %v762
  %v784 = vadd.f32 %v782, %v783
  %v785 = vtanh.pop %v784
  %v786 = vmul.f32 %v781, %v785
  %787 = vst [vmem:[#allocation3] sm:$0xff] %v786
  %s788 = scalar_lea.vmem [#allocation2], 32
  %v789 = vld [vmem:[%s788] sm:$0xff]
  %v790 = vld [vmem:[%s788 + $0x8] sm:$0xff]
  %v791 = vld [vmem:[%s788 + $0x10] sm:$0xff]
  %v792 = vld [vmem:[%s788 + $0x18] sm:$0xff]
  %v793 = vpack.c.bf16 %v786, %v786
  %794 = vmatpush.bf16.msra.mxu0 %v632
  %795 = vmatpush.bf16.msra.mxu0 %v628
  %796 = vmatpush.bf16.msra.mxu0 %v624
  %797 = vmatpush.bf16.msra.mxu0 %v620
  %798 = vmatpush.bf16.msra.mxu0 %v616
  %799 = vmatpush.bf16.msra.mxu0 %v612
  %800 = vmatpush.bf16.msra.mxu0 %v608
  %801 = vmatpush.bf16.msra.mxu0 %v604
  %802 = vmatmul.bf16.gmra.mxu0 %v793
  %v803 = vpop.f32.mrf.mxu0
  %v804 = vadd.f32 0.0, %v803
  %v805 = vpop.f32.mrf.mxu0
  %806 = vdwg.mxu0
  %807 = vmatpush.bf16.msra.mxu0 %v633
  %808 = vmatpush.bf16.msra.mxu0 %v629
  %809 = vmatpush.bf16.msra.mxu0 %v625
  %810 = vmatpush.bf16.msra.mxu0 %v621
  %811 = vmatpush.bf16.msra.mxu0 %v617
  %812 = vmatpush.bf16.msra.mxu0 %v613
  %813 = vmatpush.bf16.msra.mxu0 %v609
  %814 = vmatpush.bf16.msra.mxu0 %v605
  %815 = vmatmul.bf16.gmra.mxu0 %v793
  %v816 = vpop.f32.mrf.mxu0
  %v817 = vadd.f32 0.0, %v816
  %v818 = vpop.f32.mrf.mxu0
  %819 = vdwg.mxu0
  %820 = vmatpush.bf16.msra.mxu0 %v634
  %821 = vmatpush.bf16.msra.mxu0 %v630
  %822 = vmatpush.bf16.msra.mxu0 %v626
  %823 = vmatpush.bf16.msra.mxu0 %v622
  %824 = vmatpush.bf16.msra.mxu0 %v618
  %825 = vmatpush.bf16.msra.mxu0 %v614
  %826 = vmatpush.bf16.msra.mxu0 %v610
  %827 = vmatpush.bf16.msra.mxu0 %v606
  %828 = vmatmul.bf16.gmra.mxu0 %v793
  %v829 = vpop.f32.mrf.mxu0
  %v830 = vadd.f32 0.0, %v829
  %v831 = vpop.f32.mrf.mxu0
  %832 = vdwg.mxu0
  %833 = vmatpush.bf16.msra.mxu0 %v635
  %834 = vmatpush.bf16.msra.mxu0 %v631
  %835 = vmatpush.bf16.msra.mxu0 %v627
  %836 = vmatpush.bf16.msra.mxu0 %v623
  %837 = vmatpush.bf16.msra.mxu0 %v619
  %838 = vmatpush.bf16.msra.mxu0 %v615
  %839 = vmatpush.bf16.msra.mxu0 %v611
  %840 = vmatpush.bf16.msra.mxu0 %v607
  %841 = vmatmul.bf16.gmra.mxu0 %v793
  %v842 = vpop.f32.mrf.mxu0
  %v843 = vadd.f32 0.0, %v842
  %v844 = vpop.f32.mrf.mxu0
  %845 = vdwg.mxu0
  %v846 = vadd.f32 %v789, %v804
  %v847 = vadd.f32 %v790, %v817
  %v848 = vadd.f32 %v791, %v830
  %v849 = vadd.f32 %v792, %v843
  %v850 = vxor.u32 %v846, 2147483648
  %v851 = vmul.f32 %v850, 1.442695
  %v852 = vpow.pop %v851
  %v853 = vadd.f32 %v852, 1.0
  %v854 = vrcp.pop %v853
  %v855 = vmul.f32 %v853, %v854
  %v856 = vsub.f32 1.0, %v855
  %v857 = vmul.f32 %v854, %v856
  %v858 = vadd.f32 %v854, %v857
  %vm859 = vweird.f32 %v853
  %vm860 = vweird.f32 %v854
  %vm861 = vmor %vm859, %vm860
  %v862 = vsel %vm861, %v854, %v858
  %v863 = vand.u32 2147483647, %v853
  %vm864 = vcmp.eq.f32.partialorder %v863, 8.507059e+37
  %v865 = vand.u32 %v853, 2147483648
  %v866 = vor.u32 1.1754944e-38, %v865
  %v867 = vsel %vm864, %v866, %v862
  %v868 = vmul.f32 1.0, %v867
  %v869 = vxor.u32 %v847, 2147483648
  %v870 = vmul.f32 %v869, 1.442695
  %v871 = vpow.pop %v870
  %v872 = vadd.f32 %v871, 1.0
  %v873 = vrcp.pop %v872
  %v874 = vmul.f32 %v872, %v873
  %v875 = vsub.f32 1.0, %v874
  %v876 = vmul.f32 %v873, %v875
  %v877 = vadd.f32 %v873, %v876
  %vm878 = vweird.f32 %v872
  %vm879 = vweird.f32 %v873
  %vm880 = vmor %vm878, %vm879
  %v881 = vsel %vm880, %v873, %v877
  %v882 = vand.u32 2147483647, %v872
  %vm883 = vcmp.eq.f32.partialorder %v882, 8.507059e+37
  %v884 = vand.u32 %v872, 2147483648
  %v885 = vor.u32 1.1754944e-38, %v884
  %v886 = vsel %vm883, %v885, %v881
  %v887 = vmul.f32 1.0, %v886
  %v888 = vtanh.pop %v848
  %v889 = vxor.u32 %v849, 2147483648
  %v890 = vmul.f32 %v889, 1.442695
  %v891 = vpow.pop %v890
  %v892 = vadd.f32 %v891, 1.0
  %v893 = vrcp.pop %v892
  %v894 = vmul.f32 %v892, %v893
  %v895 = vsub.f32 1.0, %v894
  %v896 = vmul.f32 %v893, %v895
  %v897 = vadd.f32 %v893, %v896
  %vm898 = vweird.f32 %v892
  %vm899 = vweird.f32 %v893
  %vm900 = vmor %vm898, %vm899
  %v901 = vsel %vm900, %v893, %v897
  %v902 = vand.u32 2147483647, %v892
  %vm903 = vcmp.eq.f32.partialorder %v902, 8.507059e+37
  %v904 = vand.u32 %v892, 2147483648
  %v905 = vor.u32 1.1754944e-38, %v904
  %v906 = vsel %vm903, %v905, %v901
  %v907 = vmul.f32 1.0, %v906
  %v908 = vmul.f32 %v887, %v784
  %v909 = vmul.f32 %v868, %v888
  %v910 = vadd.f32 %v908, %v909
  %v911 = vtanh.pop %v910
  %v912 = vmul.f32 %v907, %v911
  %s913 = scalar_lea.vmem [#allocation3], 8
  %914 = vst [vmem:[%s913] sm:$0xff] %v912
  %s915 = scalar_lea.vmem [#allocation2], 64
  %v916 = vld [vmem:[%s915] sm:$0xff]
  %v917 = vld [vmem:[%s915 + $0x8] sm:$0xff]
  %v918 = vld [vmem:[%s915 + $0x10] sm:$0xff]
  %v919 = vld [vmem:[%s915 + $0x18] sm:$0xff]
  %v920 = vpack.c.bf16 %v912, %v912
  %921 = vmatpush.bf16.msra.mxu0 %v632
  %922 = vmatpush.bf16.msra.mxu0 %v628
  %923 = vmatpush.bf16.msra.mxu0 %v624
  %924 = vmatpush.bf16.msra.mxu0 %v620
  %925 = vmatpush.bf16.msra.mxu0 %v616
  %926 = vmatpush.bf16.msra.mxu0 %v612
  %927 = vmatpush.bf16.msra.mxu0 %v608
  %928 = vmatpush.bf16.msra.mxu0 %v604
  %929 = vmatmul.bf16.gmra.mxu0 %v920
  %v930 = vpop.f32.mrf.mxu0
  %v931 = vadd.f32 0.0, %v930
  %v932 = vpop.f32.mrf.mxu0
  %933 = vdwg.mxu0
  %934 = vmatpush.bf16.msra.mxu0 %v633
  %935 = vmatpush.bf16.msra.mxu0 %v629
  %936 = vmatpush.bf16.msra.mxu0 %v625
  %937 = vmatpush.bf16.msra.mxu0 %v621
  %938 = vmatpush.bf16.msra.mxu0 %v617
  %939 = vmatpush.bf16.msra.mxu0 %v613
  %940 = vmatpush.bf16.msra.mxu0 %v609
  %941 = vmatpush.bf16.msra.mxu0 %v605
  %942 = vmatmul.bf16.gmra.mxu0 %v920
  %v943 = vpop.f32.mrf.mxu0
  %v944 = vadd.f32 0.0, %v943
  %v945 = vpop.f32.mrf.mxu0
  %946 = vdwg.mxu0
  %947 = vmatpush.bf16.msra.mxu0 %v634
  %948 = vmatpush.bf16.msra.mxu0 %v630
  %949 = vmatpush.bf16.msra.mxu0 %v626
  %950 = vmatpush.bf16.msra.mxu0 %v622
  %951 = vmatpush.bf16.msra.mxu0 %v618
  %952 = vmatpush.bf16.msra.mxu0 %v614
  %953 = vmatpush.bf16.msra.mxu0 %v610
  %954 = vmatpush.bf16.msra.mxu0 %v606
  %955 = vmatmul.bf16.gmra.mxu0 %v920
  %v956 = vpop.f32.mrf.mxu0
  %v957 = vadd.f32 0.0, %v956
  %v958 = vpop.f32.mrf.mxu0
  %959 = vdwg.mxu0
  %960 = vmatpush.bf16.msra.mxu0 %v635
  %961 = vmatpush.bf16.msra.mxu0 %v631
  %962 = vmatpush.bf16.msra.mxu0 %v627
  %963 = vmatpush.bf16.msra.mxu0 %v623
  %964 = vmatpush.bf16.msra.mxu0 %v619
  %965 = vmatpush.bf16.msra.mxu0 %v615
  %966 = vmatpush.bf16.msra.mxu0 %v611
  %967 = vmatpush.bf16.msra.mxu0 %v607
  %968 = vmatmul.bf16.gmra.mxu0 %v920
  %v969 = vpop.f32.mrf.mxu0
  %v970 = vadd.f32 0.0, %v969
  %v971 = vpop.f32.mrf.mxu0
  %972 = vdwg.mxu0
  %v973 = vadd.f32 %v916, %v931
  %v974 = vadd.f32 %v917, %v944
  %v975 = vadd.f32 %v918, %v957
  %v976 = vadd.f32 %v919, %v970
  %v977 = vxor.u32 %v973, 2147483648
  %v978 = vmul.f32 %v977, 1.442695
  %v979 = vpow.pop %v978
  %v980 = vadd.f32 %v979, 1.0
  %v981 = vrcp.pop %v980
  %v982 = vmul.f32 %v980, %v981
  %v983 = vsub.f32 1.0, %v982
  %v984 = vmul.f32 %v981, %v983
  %v985 = vadd.f32 %v981, %v984
  %vm986 = vweird.f32 %v980
  %vm987 = vweird.f32 %v981
  %vm988 = vmor %vm986, %vm987
  %v989 = vsel %vm988, %v981, %v985
  %v990 = vand.u32 2147483647, %v980
  %vm991 = vcmp.eq.f32.partialorder %v990, 8.507059e+37
  %v992 = vand.u32 %v980, 2147483648
  %v993 = vor.u32 1.1754944e-38, %v992
  %v994 = vsel %vm991, %v993, %v989
  %v995 = vmul.f32 1.0, %v994
  %v996 = vxor.u32 %v974, 2147483648
  %v997 = vmul.f32 %v996, 1.442695
  %v998 = vpow.pop %v997
  %v999 = vadd.f32 %v998, 1.0
  %v1000 = vrcp.pop %v999
  %v1001 = vmul.f32 %v999, %v1000
  %v1002 = vsub.f32 1.0, %v1001
  %v1003 = vmul.f32 %v1000, %v1002
  %v1004 = vadd.f32 %v1000, %v1003
  %vm1005 = vweird.f32 %v999
  %vm1006 = vweird.f32 %v1000
  %vm1007 = vmor %vm1005, %vm1006
  %v1008 = vsel %vm1007, %v1000, %v1004
  %v1009 = vand.u32 2147483647, %v999
  %vm1010 = vcmp.eq.f32.partialorder %v1009, 8.507059e+37
  %v1011 = vand.u32 %v999, 2147483648
  %v1012 = vor.u32 1.1754944e-38, %v1011
  %v1013 = vsel %vm1010, %v1012, %v1008
  %v1014 = vmul.f32 1.0, %v1013
  %v1015 = vtanh.pop %v975
  %v1016 = vxor.u32 %v976, 2147483648
  %v1017 = vmul.f32 %v1016, 1.442695
  %v1018 = vpow.pop %v1017
  %v1019 = vadd.f32 %v1018, 1.0
  %v1020 = vrcp.pop %v1019
  %v1021 = vmul.f32 %v1019, %v1020
  %v1022 = vsub.f32 1.0, %v1021
  %v1023 = vmul.f32 %v1020, %v1022
  %v1024 = vadd.f32 %v1020, %v1023
  %vm1025 = vweird.f32 %v1019
  %vm1026 = vweird.f32 %v1020
  %vm1027 = vmor %vm1025, %vm1026
  %v1028 = vsel %vm1027, %v1020, %v1024
  %v1029 = vand.u32 2147483647, %v1019
  %vm1030 = vcmp.eq.f32.partialorder %v1029, 8.507059e+37
  %v1031 = vand.u32 %v1019, 2147483648
  %v1032 = vor.u32 1.1754944e-38, %v1031
  %v1033 = vsel %vm1030, %v1032, %v1028
  %v1034 = vmul.f32 1.0, %v1033
  %v1035 = vmul.f32 %v1014, %v910
  %v1036 = vmul.f32 %v995, %v1015
  %v1037 = vadd.f32 %v1035, %v1036
  %v1038 = vtanh.pop %v1037
  %v1039 = vmul.f32 %v1034, %v1038
  %s1040 = scalar_lea.vmem [#allocation3], 16
  %1041 = vst [vmem:[%s1040] sm:$0xff] %v1039
  %s1042 = scalar_lea.vmem [#allocation2], 96
  %v1043 = vld [vmem:[%s1042] sm:$0xff]
  %v1044 = vld [vmem:[%s1042 + $0x8] sm:$0xff]
  %v1045 = vld [vmem:[%s1042 + $0x10] sm:$0xff]
  %v1046 = vld [vmem:[%s1042 + $0x18] sm:$0xff]
  %v1047 = vpack.c.bf16 %v1039, %v1039
  %1048 = vmatpush.bf16.msra.mxu0 %v632
  %1049 = vmatpush.bf16.msra.mxu0 %v628
  %1050 = vmatpush.bf16.msra.mxu0 %v624
  %1051 = vmatpush.bf16.msra.mxu0 %v620
  %1052 = vmatpush.bf16.msra.mxu0 %v616
  %1053 = vmatpush.bf16.msra.mxu0 %v612
  %1054 = vmatpush.bf16.msra.mxu0 %v608
  %1055 = vmatpush.bf16.msra.mxu0 %v604
  %1056 = vmatmul.bf16.gmra.mxu0 %v1047
  %v1057 = vpop.f32.mrf.mxu0
  %v1058 = vadd.f32 0.0, %v1057
  %v1059 = vpop.f32.mrf.mxu0
  %1060 = vdwg.mxu0
  %1061 = vmatpush.bf16.msra.mxu0 %v633
  %1062 = vmatpush.bf16.msra.mxu0 %v629
  %1063 = vmatpush.bf16.msra.mxu0 %v625
  %1064 = vmatpush.bf16.msra.mxu0 %v621
  %1065 = vmatpush.bf16.msra.mxu0 %v617
  %1066 = vmatpush.bf16.msra.mxu0 %v613
  %1067 = vmatpush.bf16.msra.mxu0 %v609
  %1068 = vmatpush.bf16.msra.mxu0 %v605
  %1069 = vmatmul.bf16.gmra.mxu0 %v1047
  %v1070 = vpop.f32.mrf.mxu0
  %v1071 = vadd.f32 0.0, %v1070
  %v1072 = vpop.f32.mrf.mxu0
  %1073 = vdwg.mxu0
  %1074 = vmatpush.bf16.msra.mxu0 %v634
  %1075 = vmatpush.bf16.msra.mxu0 %v630
  %1076 = vmatpush.bf16.msra.mxu0 %v626
  %1077 = vmatpush.bf16.msra.mxu0 %v622
  %1078 = vmatpush.bf16.msra.mxu0 %v618
  %1079 = vmatpush.bf16.msra.mxu0 %v614
  %1080 = vmatpush.bf16.msra.mxu0 %v610
  %1081 = vmatpush.bf16.msra.mxu0 %v606
  %1082 = vmatmul.bf16.gmra.mxu0 %v1047
  %v1083 = vpop.f32.mrf.mxu0
  %v1084 = vadd.f32 0.0, %v1083
  %v1085 = vpop.f32.mrf.mxu0
  %1086 = vdwg.mxu0
  %1087 = vmatpush.bf16.msra.mxu0 %v635
  %1088 = vmatpush.bf16.msra.mxu0 %v631
  %1089 = vmatpush.bf16.msra.mxu0 %v627
  %1090 = vmatpush.bf16.msra.mxu0 %v623
  %1091 = vmatpush.bf16.msra.mxu0 %v619
  %1092 = vmatpush.bf16.msra.mxu0 %v615
  %1093 = vmatpush.bf16.msra.mxu0 %v611
  %1094 = vmatpush.bf16.msra.mxu0 %v607
  %1095 = vmatmul.bf16.gmra.mxu0 %v1047
  %v1096 = vpop.f32.mrf.mxu0
  %v1097 = vadd.f32 0.0, %v1096
  %v1098 = vpop.f32.mrf.mxu0
  %1099 = vdwg.mxu0
  %v1100 = vadd.f32 %v1043, %v1058
  %v1101 = vadd.f32 %v1044, %v1071
  %v1102 = vadd.f32 %v1045, %v1084
  %v1103 = vadd.f32 %v1046, %v1097
  %v1104 = vxor.u32 %v1100, 2147483648
  %v1105 = vmul.f32 %v1104, 1.442695
  %v1106 = vpow.pop %v1105
  %v1107 = vadd.f32 %v1106, 1.0
  %v1108 = vrcp.pop %v1107
  %v1109 = vmul.f32 %v1107, %v1108
  %v1110 = vsub.f32 1.0, %v1109
  %v1111 = vmul.f32 %v1108, %v1110
  %v1112 = vadd.f32 %v1108, %v1111
  %vm1113 = vweird.f32 %v1107
  %vm1114 = vweird.f32 %v1108
  %vm1115 = vmor %vm1113, %vm1114
  %v1116 = vsel %vm1115, %v1108, %v1112
  %v1117 = vand.u32 2147483647, %v1107
  %vm1118 = vcmp.eq.f32.partialorder %v1117, 8.507059e+37
  %v1119 = vand.u32 %v1107, 2147483648
  %v1120 = vor.u32 1.1754944e-38, %v1119
  %v1121 = vsel %vm1118, %v1120, %v1116
  %v1122 = vmul.f32 1.0, %v1121
  %v1123 = vxor.u32 %v1101, 2147483648
  %v1124 = vmul.f32 %v1123, 1.442695
  %v1125 = vpow.pop %v1124
  %v1126 = vadd.f32 %v1125, 1.0
  %v1127 = vrcp.pop %v1126
  %v1128 = vmul.f32 %v1126, %v1127
  %v1129 = vsub.f32 1.0, %v1128
  %v1130 = vmul.f32 %v1127, %v1129
  %v1131 = vadd.f32 %v1127, %v1130
  %vm1132 = vweird.f32 %v1126
  %vm1133 = vweird.f32 %v1127
  %vm1134 = vmor %vm1132, %vm1133
  %v1135 = vsel %vm1134, %v1127, %v1131
  %v1136 = vand.u32 2147483647, %v1126
  %vm1137 = vcmp.eq.f32.partialorder %v1136, 8.507059e+37
  %v1138 = vand.u32 %v1126, 2147483648
  %v1139 = vor.u32 1.1754944e-38, %v1138
  %v1140 = vsel %vm1137, %v1139, %v1135
  %v1141 = vmul.f32 1.0, %v1140
  %v1142 = vtanh.pop %v1102
  %v1143 = vxor.u32 %v1103, 2147483648
  %v1144 = vmul.f32 %v1143, 1.442695
  %v1145 = vpow.pop %v1144
  %v1146 = vadd.f32 %v1145, 1.0
  %v1147 = vrcp.pop %v1146
  %v1148 = vmul.f32 %v1146, %v1147
  %v1149 = vsub.f32 1.0, %v1148
  %v1150 = vmul.f32 %v1147, %v1149
  %v1151 = vadd.f32 %v1147, %v1150
  %vm1152 = vweird.f32 %v1146
  %vm1153 = vweird.f32 %v1147
  %vm1154 = vmor %vm1152, %vm1153
  %v1155 = vsel %vm1154, %v1147, %v1151
  %v1156 = vand.u32 2147483647, %v1146
  %vm1157 = vcmp.eq.f32.partialorder %v1156, 8.507059e+37
  %v1158 = vand.u32 %v1146, 2147483648
  %v1159 = vor.u32 1.1754944e-38, %v1158
  %v1160 = vsel %vm1157, %v1159, %v1155
  %v1161 = vmul.f32 1.0, %v1160
  %v1162 = vmul.f32 %v1141, %v1037
  %v1163 = vmul.f32 %v1122, %v1142
  %v1164 = vadd.f32 %v1162, %v1163
  %v1165 = vtanh.pop %v1164
  %v1166 = vmul.f32 %v1161, %v1165
  %s1167 = scalar_lea.vmem [#allocation3], 24
  %1168 = vst [vmem:[%s1167] sm:$0xff] %v1166
  %s1169 = scalar_lea.vmem [#allocation2], 128
  %v1170 = vld [vmem:[%s1169] sm:$0xff]
  %v1171 = vld [vmem:[%s1169 + $0x8] sm:$0xff]
  %v1172 = vld [vmem:[%s1169 + $0x10] sm:$0xff]
  %v1173 = vld [vmem:[%s1169 + $0x18] sm:$0xff]
  %v1174 = vpack.c.bf16 %v1166, %v1166
  %1175 = vmatpush.bf16.msra.mxu0 %v632
  %1176 = vmatpush.bf16.msra.mxu0 %v628
  %1177 = vmatpush.bf16.msra.mxu0 %v624
  %1178 = vmatpush.bf16.msra.mxu0 %v620
  %1179 = vmatpush.bf16.msra.mxu0 %v616
  %1180 = vmatpush.bf16.msra.mxu0 %v612
  %1181 = vmatpush.bf16.msra.mxu0 %v608
  %1182 = vmatpush.bf16.msra.mxu0 %v604
  %1183 = vmatmul.bf16.gmra.mxu0 %v1174
  %v1184 = vpop.f32.mrf.mxu0
  %v1185 = vadd.f32 0.0, %v1184
  %v1186 = vpop.f32.mrf.mxu0
  %1187 = vdwg.mxu0
  %1188 = vmatpush.bf16.msra.mxu0 %v633
  %1189 = vmatpush.bf16.msra.mxu0 %v629
  %1190 = vmatpush.bf16.msra.mxu0 %v625
  %1191 = vmatpush.bf16.msra.mxu0 %v621
  %1192 = vmatpush.bf16.msra.mxu0 %v617
  %1193 = vmatpush.bf16.msra.mxu0 %v613
  %1194 = vmatpush.bf16.msra.mxu0 %v609
  %1195 = vmatpush.bf16.msra.mxu0 %v605
  %1196 = vmatmul.bf16.gmra.mxu0 %v1174
  %v1197 = vpop.f32.mrf.mxu0
  %v1198 = vadd.f32 0.0, %v1197
  %v1199 = vpop.f32.mrf.mxu0
  %1200 = vdwg.mxu0
  %1201 = vmatpush.bf16.msra.mxu0 %v634
  %1202 = vmatpush.bf16.msra.mxu0 %v630
  %1203 = vmatpush.bf16.msra.mxu0 %v626
  %1204 = vmatpush.bf16.msra.mxu0 %v622
  %1205 = vmatpush.bf16.msra.mxu0 %v618
  %1206 = vmatpush.bf16.msra.mxu0 %v614
  %1207 = vmatpush.bf16.msra.mxu0 %v610
  %1208 = vmatpush.bf16.msra.mxu0 %v606
  %1209 = vmatmul.bf16.gmra.mxu0 %v1174
  %v1210 = vpop.f32.mrf.mxu0
  %v1211 = vadd.f32 0.0, %v1210
  %v1212 = vpop.f32.mrf.mxu0
  %1213 = vdwg.mxu0
  %1214 = vmatpush.bf16.msra.mxu0 %v635
  %1215 = vmatpush.bf16.msra.mxu0 %v631
  %1216 = vmatpush.bf16.msra.mxu0 %v627
  %1217 = vmatpush.bf16.msra.mxu0 %v623
  %1218 = vmatpush.bf16.msra.mxu0 %v619
  %1219 = vmatpush.bf16.msra.mxu0 %v615
  %1220 = vmatpush.bf16.msra.mxu0 %v611
  %1221 = vmatpush.bf16.msra.mxu0 %v607
  %1222 = vmatmul.bf16.gmra.mxu0 %v1174
  %v1223 = vpop.f32.mrf.mxu0
  %v1224 = vadd.f32 0.0, %v1223
  %v1225 = vpop.f32.mrf.mxu0
  %1226 = vdwg.mxu0
  %v1227 = vadd.f32 %v1170, %v1185
  %v1228 = vadd.f32 %v1171, %v1198
  %v1229 = vadd.f32 %v1172, %v1211
  %v1230 = vadd.f32 %v1173, %v1224
  %v1231 = vxor.u32 %v1227, 2147483648
  %v1232 = vmul.f32 %v1231, 1.442695
  %v1233 = vpow.pop %v1232
  %v1234 = vadd.f32 %v1233, 1.0
  %v1235 = vrcp.pop %v1234
  %v1236 = vmul.f32 %v1234, %v1235
  %v1237 = vsub.f32 1.0, %v1236
  %v1238 = vmul.f32 %v1235, %v1237
  %v1239 = vadd.f32 %v1235, %v1238
  %vm1240 = vweird.f32 %v1234
  %vm1241 = vweird.f32 %v1235
  %vm1242 = vmor %vm1240, %vm1241
  %v1243 = vsel %vm1242, %v1235, %v1239
  %v1244 = vand.u32 2147483647, %v1234
  %vm1245 = vcmp.eq.f32.partialorder %v1244, 8.507059e+37
  %v1246 = vand.u32 %v1234, 2147483648
  %v1247 = vor.u32 1.1754944e-38, %v1246
  %v1248 = vsel %vm1245, %v1247, %v1243
  %v1249 = vmul.f32 1.0, %v1248
  %v1250 = vxor.u32 %v1228, 2147483648
  %v1251 = vmul.f32 %v1250, 1.442695
  %v1252 = vpow.pop %v1251
  %v1253 = vadd.f32 %v1252, 1.0
  %v1254 = vrcp.pop %v1253
  %v1255 = vmul.f32 %v1253, %v1254
  %v1256 = vsub.f32 1.0, %v1255
  %v1257 = vmul.f32 %v1254, %v1256
  %v1258 = vadd.f32 %v1254, %v1257
  %vm1259 = vweird.f32 %v1253
  %vm1260 = vweird.f32 %v1254
  %vm1261 = vmor %vm1259, %vm1260
  %v1262 = vsel %vm1261, %v1254, %v1258
  %v1263 = vand.u32 2147483647, %v1253
  %vm1264 = vcmp.eq.f32.partialorder %v1263, 8.507059e+37
  %v1265 = vand.u32 %v1253, 2147483648
  %v1266 = vor.u32 1.1754944e-38, %v1265
  %v1267 = vsel %vm1264, %v1266, %v1262
  %v1268 = vmul.f32 1.0, %v1267
  %v1269 = vtanh.pop %v1229
  %v1270 = vxor.u32 %v1230, 2147483648
  %v1271 = vmul.f32 %v1270, 1.442695
  %v1272 = vpow.pop %v1271
  %v1273 = vadd.f32 %v1272, 1.0
  %v1274 = vrcp.pop %v1273
  %v1275 = vmul.f32 %v1273, %v1274
  %v1276 = vsub.f32 1.0, %v1275
  %v1277 = vmul.f32 %v1274, %v1276
  %v1278 = vadd.f32 %v1274, %v1277
  %vm1279 = vweird.f32 %v1273
  %vm1280 = vweird.f32 %v1274
  %vm1281 = vmor %vm1279, %vm1280
  %v1282 = vsel %vm1281, %v1274, %v1278
  %v1283 = vand.u32 2147483647, %v1273
  %vm1284 = vcmp.eq.f32.partialorder %v1283, 8.507059e+37
  %v1285 = vand.u32 %v1273, 2147483648
  %v1286 = vor.u32 1.1754944e-38, %v1285
  %v1287 = vsel %vm1284, %v1286, %v1282
  %v1288 = vmul.f32 1.0, %v1287
  %v1289 = vmul.f32 %v1268, %v1164
  %v1290 = vmul.f32 %v1249, %v1269
  %v1291 = vadd.f32 %v1289, %v1290
  %v1292 = vtanh.pop %v1291
  %v1293 = vmul.f32 %v1288, %v1292
  %s1294 = scalar_lea.vmem [#allocation3], 32
  %1295 = vst [vmem:[%s1294] sm:$0xff] %v1293
  %s1296 = scalar_lea.vmem [#allocation2], 160
  %v1297 = vld [vmem:[%s1296] sm:$0xff]
  %v1298 = vld [vmem:[%s1296 + $0x8] sm:$0xff]
  %v1299 = vld [vmem:[%s1296 + $0x10] sm:$0xff]
  %v1300 = vld [vmem:[%s1296 + $0x18] sm:$0xff]
  %v1301 = vpack.c.bf16 %v1293, %v1293
  %1302 = vmatpush.bf16.msra.mxu0 %v632
  %1303 = vmatpush.bf16.msra.mxu0 %v628
  %1304 = vmatpush.bf16.msra.mxu0 %v624
  %1305 = vmatpush.bf16.msra.mxu0 %v620
  %1306 = vmatpush.bf16.msra.mxu0 %v616
  %1307 = vmatpush.bf16.msra.mxu0 %v612
  %1308 = vmatpush.bf16.msra.mxu0 %v608
  %1309 = vmatpush.bf16.msra.mxu0 %v604
  %1310 = vmatmul.bf16.gmra.mxu0 %v1301
  %v1311 = vpop.f32.mrf.mxu0
  %v1312 = vadd.f32 0.0, %v1311
  %v1313 = vpop.f32.mrf.mxu0
  %1314 = vdwg.mxu0
  %1315 = vmatpush.bf16.msra.mxu0 %v633
  %1316 = vmatpush.bf16.msra.mxu0 %v629
  %1317 = vmatpush.bf16.msra.mxu0 %v625
  %1318 = vmatpush.bf16.msra.mxu0 %v621
  %1319 = vmatpush.bf16.msra.mxu0 %v617
  %1320 = vmatpush.bf16.msra.mxu0 %v613
  %1321 = vmatpush.bf16.msra.mxu0 %v609
  %1322 = vmatpush.bf16.msra.mxu0 %v605
  %1323 = vmatmul.bf16.gmra.mxu0 %v1301
  %v1324 = vpop.f32.mrf.mxu0
  %v1325 = vadd.f32 0.0, %v1324
  %v1326 = vpop.f32.mrf.mxu0
  %1327 = vdwg.mxu0
  %1328 = vmatpush.bf16.msra.mxu0 %v634
  %1329 = vmatpush.bf16.msra.mxu0 %v630
  %1330 = vmatpush.bf16.msra.mxu0 %v626
  %1331 = vmatpush.bf16.msra.mxu0 %v622
  %1332 = vmatpush.bf16.msra.mxu0 %v618
  %1333 = vmatpush.bf16.msra.mxu0 %v614
  %1334 = vmatpush.bf16.msra.mxu0 %v610
  %1335 = vmatpush.bf16.msra.mxu0 %v606
  %1336 = vmatmul.bf16.gmra.mxu0 %v1301
  %v1337 = vpop.f32.mrf.mxu0
  %v1338 = vadd.f32 0.0, %v1337
  %v1339 = vpop.f32.mrf.mxu0
  %1340 = vdwg.mxu0
  %1341 = vmatpush.bf16.msra.mxu0 %v635
  %1342 = vmatpush.bf16.msra.mxu0 %v631
  %1343 = vmatpush.bf16.msra.mxu0 %v627
  %1344 = vmatpush.bf16.msra.mxu0 %v623
  %1345 = vmatpush.bf16.msra.mxu0 %v619
  %1346 = vmatpush.bf16.msra.mxu0 %v615
  %1347 = vmatpush.bf16.msra.mxu0 %v611
  %1348 = vmatpush.bf16.msra.mxu0 %v607
  %1349 = vmatmul.bf16.gmra.mxu0 %v1301
  %v1350 = vpop.f32.mrf.mxu0
  %v1351 = vadd.f32 0.0, %v1350
  %v1352 = vpop.f32.mrf.mxu0
  %1353 = vdwg.mxu0
  %v1354 = vadd.f32 %v1297, %v1312
  %v1355 = vadd.f32 %v1298, %v1325
  %v1356 = vadd.f32 %v1299, %v1338
  %v1357 = vadd.f32 %v1300, %v1351
  %v1358 = vxor.u32 %v1354, 2147483648
  %v1359 = vmul.f32 %v1358, 1.442695
  %v1360 = vpow.pop %v1359
  %v1361 = vadd.f32 %v1360, 1.0
  %v1362 = vrcp.pop %v1361
  %v1363 = vmul.f32 %v1361, %v1362
  %v1364 = vsub.f32 1.0, %v1363
  %v1365 = vmul.f32 %v1362, %v1364
  %v1366 = vadd.f32 %v1362, %v1365
  %vm1367 = vweird.f32 %v1361
  %vm1368 = vweird.f32 %v1362
  %vm1369 = vmor %vm1367, %vm1368
  %v1370 = vsel %vm1369, %v1362, %v1366
  %v1371 = vand.u32 2147483647, %v1361
  %vm1372 = vcmp.eq.f32.partialorder %v1371, 8.507059e+37
  %v1373 = vand.u32 %v1361, 2147483648
  %v1374 = vor.u32 1.1754944e-38, %v1373
  %v1375 = vsel %vm1372, %v1374, %v1370
  %v1376 = vmul.f32 1.0, %v1375
  %v1377 = vxor.u32 %v1355, 2147483648
  %v1378 = vmul.f32 %v1377, 1.442695
  %v1379 = vpow.pop %v1378
  %v1380 = vadd.f32 %v1379, 1.0
  %v1381 = vrcp.pop %v1380
  %v1382 = vmul.f32 %v1380, %v1381
  %v1383 = vsub.f32 1.0, %v1382
  %v1384 = vmul.f32 %v1381, %v1383
  %v1385 = vadd.f32 %v1381, %v1384
  %vm1386 = vweird.f32 %v1380
  %vm1387 = vweird.f32 %v1381
  %vm1388 = vmor %vm1386, %vm1387
  %v1389 = vsel %vm1388, %v1381, %v1385
  %v1390 = vand.u32 2147483647, %v1380
  %vm1391 = vcmp.eq.f32.partialorder %v1390, 8.507059e+37
  %v1392 = vand.u32 %v1380, 2147483648
  %v1393 = vor.u32 1.1754944e-38, %v1392
  %v1394 = vsel %vm1391, %v1393, %v1389
  %v1395 = vmul.f32 1.0, %v1394
  %v1396 = vtanh.pop %v1356
  %v1397 = vxor.u32 %v1357, 2147483648
  %v1398 = vmul.f32 %v1397, 1.442695
  %v1399 = vpow.pop %v1398
  %v1400 = vadd.f32 %v1399, 1.0
  %v1401 = vrcp.pop %v1400
  %v1402 = vmul.f32 %v1400, %v1401
  %v1403 = vsub.f32 1.0, %v1402
  %v1404 = vmul.f32 %v1401, %v1403
  %v1405 = vadd.f32 %v1401, %v1404
  %vm1406 = vweird.f32 %v1400
  %vm1407 = vweird.f32 %v1401
  %vm1408 = vmor %vm1406, %vm1407
  %v1409 = vsel %vm1408, %v1401, %v1405
  %v1410 = vand.u32 2147483647, %v1400
  %vm1411 = vcmp.eq.f32.partialorder %v1410, 8.507059e+37
  %v1412 = vand.u32 %v1400, 2147483648
  %v1413 = vor.u32 1.1754944e-38, %v1412
  %v1414 = vsel %vm1411, %v1413, %v1409
  %v1415 = vmul.f32 1.0, %v1414
  %v1416 = vmul.f32 %v1395, %v1291
  %v1417 = vmul.f32 %v1376, %v1396
  %v1418 = vadd.f32 %v1416, %v1417
  %v1419 = vtanh.pop %v1418
  %v1420 = vmul.f32 %v1415, %v1419
  %s1421 = scalar_lea.vmem [#allocation3], 40
  %1422 = vst [vmem:[%s1421] sm:$0xff] %v1420
  %s1423 = scalar_lea.vmem [#allocation2], 192
  %v1424 = vld [vmem:[%s1423] sm:$0xff]
  %v1425 = vld [vmem:[%s1423 + $0x8] sm:$0xff]
  %v1426 = vld [vmem:[%s1423 + $0x10] sm:$0xff]
  %v1427 = vld [vmem:[%s1423 + $0x18] sm:$0xff]
  %v1428 = vpack.c.bf16 %v1420, %v1420
  %1429 = vmatpush.bf16.msra.mxu0 %v632
  %1430 = vmatpush.bf16.msra.mxu0 %v628
  %1431 = vmatpush.bf16.msra.mxu0 %v624
  %1432 = vmatpush.bf16.msra.mxu0 %v620
  %1433 = vmatpush.bf16.msra.mxu0 %v616
  %1434 = vmatpush.bf16.msra.mxu0 %v612
  %1435 = vmatpush.bf16.msra.mxu0 %v608
  %1436 = vmatpush.bf16.msra.mxu0 %v604
  %1437 = vmatmul.bf16.gmra.mxu0 %v1428
  %v1438 = vpop.f32.mrf.mxu0
  %v1439 = vadd.f32 0.0, %v1438
  %v1440 = vpop.f32.mrf.mxu0
  %1441 = vdwg.mxu0
  %1442 = vmatpush.bf16.msra.mxu0 %v633
  %1443 = vmatpush.bf16.msra.mxu0 %v629
  %1444 = vmatpush.bf16.msra.mxu0 %v625
  %1445 = vmatpush.bf16.msra.mxu0 %v621
  %1446 = vmatpush.bf16.msra.mxu0 %v617
  %1447 = vmatpush.bf16.msra.mxu0 %v613
  %1448 = vmatpush.bf16.msra.mxu0 %v609
  %1449 = vmatpush.bf16.msra.mxu0 %v605
  %1450 = vmatmul.bf16.gmra.mxu0 %v1428
  %v1451 = vpop.f32.mrf.mxu0
  %v1452 = vadd.f32 0.0, %v1451
  %v1453 = vpop.f32.mrf.mxu0
  %1454 = vdwg.mxu0
  %1455 = vmatpush.bf16.msra.mxu0 %v634
  %1456 = vmatpush.bf16.msra.mxu0 %v630
  %1457 = vmatpush.bf16.msra.mxu0 %v626
  %1458 = vmatpush.bf16.msra.mxu0 %v622
  %1459 = vmatpush.bf16.msra.mxu0 %v618
  %1460 = vmatpush.bf16.msra.mxu0 %v614
  %1461 = vmatpush.bf16.msra.mxu0 %v610
  %1462 = vmatpush.bf16.msra.mxu0 %v606
  %1463 = vmatmul.bf16.gmra.mxu0 %v1428
  %v1464 = vpop.f32.mrf.mxu0
  %v1465 = vadd.f32 0.0, %v1464
  %v1466 = vpop.f32.mrf.mxu0
  %1467 = vdwg.mxu0
  %1468 = vmatpush.bf16.msra.mxu0 %v635
  %1469 = vmatpush.bf16.msra.mxu0 %v631
  %1470 = vmatpush.bf16.msra.mxu0 %v627
  %1471 = vmatpush.bf16.msra.mxu0 %v623
  %1472 = vmatpush.bf16.msra.mxu0 %v619
  %1473 = vmatpush.bf16.msra.mxu0 %v615
  %1474 = vmatpush.bf16.msra.mxu0 %v611
  %1475 = vmatpush.bf16.msra.mxu0 %v607
  %1476 = vmatmul.bf16.gmra.mxu0 %v1428
  %v1477 = vpop.f32.mrf.mxu0
  %v1478 = vadd.f32 0.0, %v1477
  %v1479 = vpop.f32.mrf.mxu0
  %1480 = vdwg.mxu0
  %v1481 = vadd.f32 %v1424, %v1439
  %v1482 = vadd.f32 %v1425, %v1452
  %v1483 = vadd.f32 %v1426, %v1465
  %v1484 = vadd.f32 %v1427, %v1478
  %v1485 = vxor.u32 %v1481, 2147483648
  %v1486 = vmul.f32 %v1485, 1.442695
  %v1487 = vpow.pop %v1486
  %v1488 = vadd.f32 %v1487, 1.0
  %v1489 = vrcp.pop %v1488
  %v1490 = vmul.f32 %v1488, %v1489
  %v1491 = vsub.f32 1.0, %v1490
  %v1492 = vmul.f32 %v1489, %v1491
  %v1493 = vadd.f32 %v1489, %v1492
  %vm1494 = vweird.f32 %v1488
  %vm1495 = vweird.f32 %v1489
  %vm1496 = vmor %vm1494, %vm1495
  %v1497 = vsel %vm1496, %v1489, %v1493
  %v1498 = vand.u32 2147483647, %v1488
  %vm1499 = vcmp.eq.f32.partialorder %v1498, 8.507059e+37
  %v1500 = vand.u32 %v1488, 2147483648
  %v1501 = vor.u32 1.1754944e-38, %v1500
  %v1502 = vsel %vm1499, %v1501, %v1497
  %v1503 = vmul.f32 1.0, %v1502
  %v1504 = vxor.u32 %v1482, 2147483648
  %v1505 = vmul.f32 %v1504, 1.442695
  %v1506 = vpow.pop %v1505
  %v1507 = vadd.f32 %v1506, 1.0
  %v1508 = vrcp.pop %v1507
  %v1509 = vmul.f32 %v1507, %v1508
  %v1510 = vsub.f32 1.0, %v1509
  %v1511 = vmul.f32 %v1508, %v1510
  %v1512 = vadd.f32 %v1508, %v1511
  %vm1513 = vweird.f32 %v1507
  %vm1514 = vweird.f32 %v1508
  %vm1515 = vmor %vm1513, %vm1514
  %v1516 = vsel %vm1515, %v1508, %v1512
  %v1517 = vand.u32 2147483647, %v1507
  %vm1518 = vcmp.eq.f32.partialorder %v1517, 8.507059e+37
  %v1519 = vand.u32 %v1507, 2147483648
  %v1520 = vor.u32 1.1754944e-38, %v1519
  %v1521 = vsel %vm1518, %v1520, %v1516
  %v1522 = vmul.f32 1.0, %v1521
  %v1523 = vtanh.pop %v1483
  %v1524 = vxor.u32 %v1484, 2147483648
  %v1525 = vmul.f32 %v1524, 1.442695
  %v1526 = vpow.pop %v1525
  %v1527 = vadd.f32 %v1526, 1.0
  %v1528 = vrcp.pop %v1527
  %v1529 = vmul.f32 %v1527, %v1528
  %v1530 = vsub.f32 1.0, %v1529
  %v1531 = vmul.f32 %v1528, %v1530
  %v1532 = vadd.f32 %v1528, %v1531
  %vm1533 = vweird.f32 %v1527
  %vm1534 = vweird.f32 %v1528
  %vm1535 = vmor %vm1533, %vm1534
  %v1536 = vsel %vm1535, %v1528, %v1532
  %v1537 = vand.u32 2147483647, %v1527
  %vm1538 = vcmp.eq.f32.partialorder %v1537, 8.507059e+37
  %v1539 = vand.u32 %v1527, 2147483648
  %v1540 = vor.u32 1.1754944e-38, %v1539
  %v1541 = vsel %vm1538, %v1540, %v1536
  %v1542 = vmul.f32 1.0, %v1541
  %v1543 = vmul.f32 %v1522, %v1418
  %v1544 = vmul.f32 %v1503, %v1523
  %v1545 = vadd.f32 %v1543, %v1544
  %v1546 = vtanh.pop %v1545
  %v1547 = vmul.f32 %v1542, %v1546
  %s1548 = scalar_lea.vmem [#allocation3], 48
  %1549 = vst [vmem:[%s1548] sm:$0xff] %v1547
  %s1550 = scalar_lea.vmem [#allocation2], 224
  %v1551 = vld [vmem:[%s1550] sm:$0xff]
  %v1552 = vld [vmem:[%s1550 + $0x8] sm:$0xff]
  %v1553 = vld [vmem:[%s1550 + $0x10] sm:$0xff]
  %v1554 = vld [vmem:[%s1550 + $0x18] sm:$0xff]
  %v1555 = vpack.c.bf16 %v1547, %v1547
  %1556 = vmatpush.bf16.msra.mxu0 %v632
  %1557 = vmatpush.bf16.msra.mxu0 %v628
  %1558 = vmatpush.bf16.msra.mxu0 %v624
  %1559 = vmatpush.bf16.msra.mxu0 %v620
  %1560 = vmatpush.bf16.msra.mxu0 %v616
  %1561 = vmatpush.bf16.msra.mxu0 %v612
  %1562 = vmatpush.bf16.msra.mxu0 %v608
  %1563 = vmatpush.bf16.msra.mxu0 %v604
  %1564 = vmatmul.bf16.gmra.mxu0 %v1555
  %v1565 = vpop.f32.mrf.mxu0
  %v1566 = vadd.f32 0.0, %v1565
  %v1567 = vpop.f32.mrf.mxu0
  %1568 = vdwg.mxu0
  %1569 = vmatpush.bf16.msra.mxu0 %v633
  %1570 = vmatpush.bf16.msra.mxu0 %v629
  %1571 = vmatpush.bf16.msra.mxu0 %v625
  %1572 = vmatpush.bf16.msra.mxu0 %v621
  %1573 = vmatpush.bf16.msra.mxu0 %v617
  %1574 = vmatpush.bf16.msra.mxu0 %v613
  %1575 = vmatpush.bf16.msra.mxu0 %v609
  %1576 = vmatpush.bf16.msra.mxu0 %v605
  %1577 = vmatmul.bf16.gmra.mxu0 %v1555
  %v1578 = vpop.f32.mrf.mxu0
  %v1579 = vadd.f32 0.0, %v1578
  %v1580 = vpop.f32.mrf.mxu0
  %1581 = vdwg.mxu0
  %1582 = vmatpush.bf16.msra.mxu0 %v634
  %1583 = vmatpush.bf16.msra.mxu0 %v630
  %1584 = vmatpush.bf16.msra.mxu0 %v626
  %1585 = vmatpush.bf16.msra.mxu0 %v622
  %1586 = vmatpush.bf16.msra.mxu0 %v618
  %1587 = vmatpush.bf16.msra.mxu0 %v614
  %1588 = vmatpush.bf16.msra.mxu0 %v610
  %1589 = vmatpush.bf16.msra.mxu0 %v606
  %1590 = vmatmul.bf16.gmra.mxu0 %v1555
  %v1591 = vpop.f32.mrf.mxu0
  %v1592 = vadd.f32 0.0, %v1591
  %v1593 = vpop.f32.mrf.mxu0
  %1594 = vdwg.mxu0
  %1595 = vmatpush.bf16.msra.mxu0 %v635
  %1596 = vmatpush.bf16.msra.mxu0 %v631
  %1597 = vmatpush.bf16.msra.mxu0 %v627
  %1598 = vmatpush.bf16.msra.mxu0 %v623
  %1599 = vmatpush.bf16.msra.mxu0 %v619
  %1600 = vmatpush.bf16.msra.mxu0 %v615
  %1601 = vmatpush.bf16.msra.mxu0 %v611
  %1602 = vmatpush.bf16.msra.mxu0 %v607
  %1603 = vmatmul.bf16.gmra.mxu0 %v1555
  %v1604 = vpop.f32.mrf.mxu0
  %v1605 = vadd.f32 0.0, %v1604
  %v1606 = vpop.f32.mrf.mxu0
  %1607 = vdwg.mxu0
  %v1608 = vadd.f32 %v1551, %v1566
  %v1609 = vadd.f32 %v1552, %v1579
  %v1610 = vadd.f32 %v1553, %v1592
  %v1611 = vadd.f32 %v1554, %v1605
  %v1612 = vxor.u32 %v1608, 2147483648
  %v1613 = vmul.f32 %v1612, 1.442695
  %v1614 = vpow.pop %v1613
  %v1615 = vadd.f32 %v1614, 1.0
  %v1616 = vrcp.pop %v1615
  %v1617 = vmul.f32 %v1615, %v1616
  %v1618 = vsub.f32 1.0, %v1617
  %v1619 = vmul.f32 %v1616, %v1618
  %v1620 = vadd.f32 %v1616, %v1619
  %vm1621 = vweird.f32 %v1615
  %vm1622 = vweird.f32 %v1616
  %vm1623 = vmor %vm1621, %vm1622
  %v1624 = vsel %vm1623, %v1616, %v1620
  %v1625 = vand.u32 2147483647, %v1615
  %vm1626 = vcmp.eq.f32.partialorder %v1625, 8.507059e+37
  %v1627 = vand.u32 %v1615, 2147483648
  %v1628 = vor.u32 1.1754944e-38, %v1627
  %v1629 = vsel %vm1626, %v1628, %v1624
  %v1630 = vmul.f32 1.0, %v1629
  %v1631 = vxor.u32 %v1609, 2147483648
  %v1632 = vmul.f32 %v1631, 1.442695
  %v1633 = vpow.pop %v1632
  %v1634 = vadd.f32 %v1633, 1.0
  %v1635 = vrcp.pop %v1634
  %v1636 = vmul.f32 %v1634, %v1635
  %v1637 = vsub.f32 1.0, %v1636
  %v1638 = vmul.f32 %v1635, %v1637
  %v1639 = vadd.f32 %v1635, %v1638
  %vm1640 = vweird.f32 %v1634
  %vm1641 = vweird.f32 %v1635
  %vm1642 = vmor %vm1640, %vm1641
  %v1643 = vsel %vm1642, %v1635, %v1639
  %v1644 = vand.u32 2147483647, %v1634
  %vm1645 = vcmp.eq.f32.partialorder %v1644, 8.507059e+37
  %v1646 = vand.u32 %v1634, 2147483648
  %v1647 = vor.u32 1.1754944e-38, %v1646
  %v1648 = vsel %vm1645, %v1647, %v1643
  %v1649 = vmul.f32 1.0, %v1648
  %v1650 = vtanh.pop %v1610
  %v1651 = vxor.u32 %v1611, 2147483648
  %v1652 = vmul.f32 %v1651, 1.442695
  %v1653 = vpow.pop %v1652
  %v1654 = vadd.f32 %v1653, 1.0
  %v1655 = vrcp.pop %v1654
  %v1656 = vmul.f32 %v1654, %v1655
  %v1657 = vsub.f32 1.0, %v1656
  %v1658 = vmul.f32 %v1655, %v1657
  %v1659 = vadd.f32 %v1655, %v1658
  %vm1660 = vweird.f32 %v1654
  %vm1661 = vweird.f32 %v1655
  %vm1662 = vmor %vm1660, %vm1661
  %v1663 = vsel %vm1662, %v1655, %v1659
  %v1664 = vand.u32 2147483647, %v1654
  %vm1665 = vcmp.eq.f32.partialorder %v1664, 8.507059e+37
  %v1666 = vand.u32 %v1654, 2147483648
  %v1667 = vor.u32 1.1754944e-38, %v1666
  %v1668 = vsel %vm1665, %v1667, %v1663
  %v1669 = vmul.f32 1.0, %v1668
  %v1670 = vmul.f32 %v1649, %v1545
  %v1671 = vmul.f32 %v1630, %v1650
  %v1672 = vadd.f32 %v1670, %v1671
  %v1673 = vtanh.pop %v1672
  %v1674 = vmul.f32 %v1669, %v1673
  %s1675 = scalar_lea.vmem [#allocation3], 56
  %1676 = vst [vmem:[%s1675] sm:$0xff] %v1674
  %v1677 = vld [vmem:[#allocation3] sm:$0xff]
  %v1678 = vld [vmem:[#allocation3 + $0x8] sm:$0xff]
  %v1679 = vld [vmem:[#allocation3 + $0x10] sm:$0xff]
  %v1680 = vld [vmem:[#allocation3 + $0x18] sm:$0xff]
  %v1681 = vld [vmem:[#allocation3 + $0x20] sm:$0xff]
  %v1682 = vld [vmem:[#allocation3 + $0x28] sm:$0xff]
  %v1683 = vld [vmem:[#allocation3 + $0x30] sm:$0xff]
  %v1684 = vld [vmem:[#allocation3 + $0x38] sm:$0xff]
  %v1685 = vpack.c.bf16 %v1678, %v1677
  %v1686 = vpack.c.bf16 %v1680, %v1679
  %v1687 = vpack.c.bf16 %v1682, %v1681
  %v1688 = vpack.c.bf16 %v1684, %v1683
  %v1689 = vld [vmem:[%s1675] sm:$0xff]
  %v1690 = vld [vmem:[%s1548] sm:$0xff]
  %v1691 = vld [vmem:[%s1421] sm:$0xff]
  %v1692 = vld [vmem:[%s1294] sm:$0xff]
  %v1693 = vld [vmem:[%s1167] sm:$0xff]
  %v1694 = vld [vmem:[%s1040] sm:$0xff]
  %v1695 = vld [vmem:[%s913] sm:$0xff]
  %v1696 = vld [vmem:[#allocation3] sm:$0xff]
  %v1697 = vpack.c.bf16 %v1690, %v1689
  %v1698 = vpack.c.bf16 %v1692, %v1691
  %v1699 = vpack.c.bf16 %v1694, %v1693
  %v1700 = vpack.c.bf16 %v1696, %v1695
  %v1701 = vld [vmem:[%s7] sm:$0xf]
  %v1702 = vld [vmem:[%s7 + $0x4] sm:$0xf]
  %v1703 = vld [vmem:[%s7 + $0x8] sm:$0xf]
  %v1704 = vld [vmem:[%s7 + $0xc] sm:$0xf]
  %v1705 = vld [vmem:[%s7 + $0x10] sm:$0xf]
  %v1706 = vld [vmem:[%s7 + $0x14] sm:$0xf]
  %v1707 = vld [vmem:[%s7 + $0x18] sm:$0xf]
  %v1708 = vld [vmem:[%s7 + $0x1c] sm:$0xf]
  %v1709 = vld [vmem:[%s7 + $0x20] sm:$0xf]
  %v1710 = vld [vmem:[%s7 + $0x24] sm:$0xf]
  %v1711 = vld [vmem:[%s7 + $0x28] sm:$0xf]
  %v1712 = vld [vmem:[%s7 + $0x2c] sm:$0xf]
  %v1713 = vld [vmem:[%s7 + $0x30] sm:$0xf]
  %v1714 = vld [vmem:[%s7 + $0x34] sm:$0xf]
  %v1715 = vld [vmem:[%s7 + $0x38] sm:$0xf]
  %v1716 = vld [vmem:[%s7 + $0x3c] sm:$0xf]
  %v1717 = vld [vmem:[%s8] sm:$0xf]
  %v1718 = vld [vmem:[%s8 + $0x4] sm:$0xf]
  %v1719 = vld [vmem:[%s8 + $0x8] sm:$0xf]
  %v1720 = vld [vmem:[%s8 + $0xc] sm:$0xf]
  %v1721 = vld [vmem:[%s8 + $0x10] sm:$0xf]
  %v1722 = vld [vmem:[%s8 + $0x14] sm:$0xf]
  %v1723 = vld [vmem:[%s8 + $0x18] sm:$0xf]
  %v1724 = vld [vmem:[%s8 + $0x1c] sm:$0xf]
  %v1725 = vld [vmem:[%s8 + $0x20] sm:$0xf]
  %v1726 = vld [vmem:[%s8 + $0x24] sm:$0xf]
  %v1727 = vld [vmem:[%s8 + $0x28] sm:$0xf]
  %v1728 = vld [vmem:[%s8 + $0x2c] sm:$0xf]
  %v1729 = vld [vmem:[%s8 + $0x30] sm:$0xf]
  %v1730 = vld [vmem:[%s8 + $0x34] sm:$0xf]
  %v1731 = vld [vmem:[%s8 + $0x38] sm:$0xf]
  %v1732 = vld [vmem:[%s8 + $0x3c] sm:$0xf]
  %v1749 = vunpack.c.l.b16 %v1717
  %v1750 = vunpack.c.l.b16 %v1718
  %v1751 = vunpack.c.l.b16 %v1719
  %v1752 = vunpack.c.l.b16 %v1720
  %v1753 = vunpack.c.l.b16 %v1721
  %v1754 = vunpack.c.l.b16 %v1722
  %v1755 = vunpack.c.l.b16 %v1723
  %v1756 = vunpack.c.l.b16 %v1724
  %v1757 = vunpack.c.l.b16 %v1725
  %v1758 = vunpack.c.l.b16 %v1726
  %v1759 = vunpack.c.l.b16 %v1727
  %v1760 = vunpack.c.l.b16 %v1728
  %v1761 = vunpack.c.l.b16 %v1729
  %v1762 = vunpack.c.l.b16 %v1730
  %v1763 = vunpack.c.l.b16 %v1731
  %v1764 = vunpack.c.l.b16 %v1732
  %v1765 = vpack.c.b16 %v1750, %v1749
  %v1766 = vpack.c.b16 %v1752, %v1751
  %v1767 = vpack.c.b16 %v1754, %v1753
  %v1768 = vpack.c.b16 %v1756, %v1755
  %v1769 = vpack.c.b16 %v1758, %v1757
  %v1770 = vpack.c.b16 %v1760, %v1759
  %v1771 = vpack.c.b16 %v1762, %v1761
  %v1772 = vpack.c.b16 %v1764, %v1763
  %1781 = vmatpush.bf16.msra.mxu0 %v1772
  %1782 = vmatpush.bf16.msra.mxu0 %v1771
  %1783 = vmatpush.bf16.msra.mxu0 %v1770
  %1784 = vmatpush.bf16.msra.mxu0 %v1769
  %1785 = vmatpush.bf16.msra.mxu0 %v1768
  %1786 = vmatpush.bf16.msra.mxu0 %v1767
  %1787 = vmatpush.bf16.msra.mxu0 %v1766
  %1788 = vmatpush.bf16.msra.mxu0 %v1765
  %1789 = vmatmul.bf16.gmra.mxu0 %v1697
  %v1790 = vpop.f32.mrf.mxu0
  %v1791 = vadd.f32 0.0, %v1790
  %v1792 = vpop.f32.mrf.mxu0
  %v1793 = vadd.f32 0.0, %v1792
  %1794 = vmatmul.bf16.gmra.mxu0 %v1698
  %v1795 = vpop.f32.mrf.mxu0
  %v1796 = vadd.f32 0.0, %v1795
  %v1797 = vpop.f32.mrf.mxu0
  %v1798 = vadd.f32 0.0, %v1797
  %1799 = vmatmul.bf16.gmra.mxu0 %v1699
  %v1800 = vpop.f32.mrf.mxu0
  %v1801 = vadd.f32 0.0, %v1800
  %v1802 = vpop.f32.mrf.mxu0
  %v1803 = vadd.f32 0.0, %v1802
  %1804 = vmatmul.bf16.gmra.mxu0 %v1700
  %v1805 = vpop.f32.mrf.mxu0
  %v1806 = vadd.f32 0.0, %v1805
  %v1807 = vpop.f32.mrf.mxu0
  %v1808 = vadd.f32 0.0, %v1807
  %1809 = vdwg.mxu0
  %v1826 = vunpack.c.l.b16 %v1701
  %v1827 = vunpack.c.l.b16 %v1702
  %v1828 = vunpack.c.l.b16 %v1703
  %v1829 = vunpack.c.l.b16 %v1704
  %v1830 = vunpack.c.l.b16 %v1705
  %v1831 = vunpack.c.l.b16 %v1706
  %v1832 = vunpack.c.l.b16 %v1707
  %v1833 = vunpack.c.l.b16 %v1708
  %v1834 = vunpack.c.l.b16 %v1709
  %v1835 = vunpack.c.l.b16 %v1710
  %v1836 = vunpack.c.l.b16 %v1711
  %v1837 = vunpack.c.l.b16 %v1712
  %v1838 = vunpack.c.l.b16 %v1713
  %v1839 = vunpack.c.l.b16 %v1714
  %v1840 = vunpack.c.l.b16 %v1715
  %v1841 = vunpack.c.l.b16 %v1716
  %v1842 = vpack.c.b16 %v1827, %v1826
  %v1843 = vpack.c.b16 %v1829, %v1828
  %v1844 = vpack.c.b16 %v1831, %v1830
  %v1845 = vpack.c.b16 %v1833, %v1832
  %v1846 = vpack.c.b16 %v1835, %v1834
  %v1847 = vpack.c.b16 %v1837, %v1836
  %v1848 = vpack.c.b16 %v1839, %v1838
  %v1849 = vpack.c.b16 %v1841, %v1840
  %1858 = vmatpush.bf16.msra.mxu0 %v1849
  %1859 = vmatpush.bf16.msra.mxu0 %v1848
  %1860 = vmatpush.bf16.msra.mxu0 %v1847
  %1861 = vmatpush.bf16.msra.mxu0 %v1846
  %1862 = vmatpush.bf16.msra.mxu0 %v1845
  %1863 = vmatpush.bf16.msra.mxu0 %v1844
  %1864 = vmatpush.bf16.msra.mxu0 %v1843
  %1865 = vmatpush.bf16.msra.mxu0 %v1842
  %1866 = vmatmul.bf16.gmra.mxu0 %v1685
  %v1867 = vpop.f32.mrf.mxu0
  %v1868 = vadd.f32 %v1791, %v1867
  %v1869 = vpop.f32.mrf.mxu0
  %v1870 = vadd.f32 %v1793, %v1869
  %1871 = vmatmul.bf16.gmra.mxu0 %v1686
  %v1872 = vpop.f32.mrf.mxu0
  %v1873 = vadd.f32 %v1796, %v1872
  %v1874 = vpop.f32.mrf.mxu0
  %v1875 = vadd.f32 %v1798, %v1874
  %1876 = vmatmul.bf16.gmra.mxu0 %v1687
  %v1877 = vpop.f32.mrf.mxu0
  %v1878 = vadd.f32 %v1801, %v1877
  %v1879 = vpop.f32.mrf.mxu0
  %v1880 = vadd.f32 %v1803, %v1879
  %1881 = vmatmul.bf16.gmra.mxu0 %v1688
  %v1882 = vpop.f32.mrf.mxu0
  %v1883 = vadd.f32 %v1806, %v1882
  %v1884 = vpop.f32.mrf.mxu0
  %v1885 = vadd.f32 %v1808, %v1884
  %1886 = vdwg.mxu0
  %v1887 = vld [vmem:[%s9] sm:$0x1]
  %v1889 = vperm.slane %v1887, 0
  %v1891 = vadd.f32 %v1868, %v1889
  %v1892 = vadd.f32 %v1870, %v1889
  %v1893 = vadd.f32 %v1873, %v1889
  %v1894 = vadd.f32 %v1875, %v1889
  %v1895 = vadd.f32 %v1878, %v1889
  %v1896 = vadd.f32 %v1880, %v1889
  %v1897 = vadd.f32 %v1883, %v1889
  %v1898 = vadd.f32 %v1885, %v1889
  %1899 = vmax.xlane.f32.xlu0 %v1891
  %v1900 = vpop.xlane.xlu0 %1899
  %1901 = vmax.xlane.f32.xlu0 %v1892
  %v1902 = vpop.xlane.xlu0 %1901
  %1903 = vmax.xlane.f32.xlu0 %v1893
  %v1904 = vpop.xlane.xlu0 %1903
  %1905 = vmax.xlane.f32.xlu0 %v1894
  %v1906 = vpop.xlane.xlu0 %1905
  %1907 = vmax.xlane.f32.xlu0 %v1895
  %v1908 = vpop.xlane.xlu0 %1907
  %1909 = vmax.xlane.f32.xlu0 %v1896
  %v1910 = vpop.xlane.xlu0 %1909
  %1911 = vmax.xlane.f32.xlu0 %v1897
  %v1912 = vpop.xlane.xlu0 %1911
  %1913 = vmax.xlane.f32.xlu0 %v1898
  %v1914 = vpop.xlane.xlu0 %1913
  %v1915 = vsub.f32 %v1891, %v1900
  %v1916 = vsub.f32 %v1892, %v1902
  %v1917 = vsub.f32 %v1893, %v1904
  %v1918 = vsub.f32 %v1894, %v1906
  %v1919 = vsub.f32 %v1895, %v1908
  %v1920 = vsub.f32 %v1896, %v1910
  %v1921 = vsub.f32 %v1897, %v1912
  %v1922 = vsub.f32 %v1898, %v1914
  %v1923 = vmul.f32 %v1915, 1.442695
  %v1924 = vpow.pop %v1923
  %v1925 = vmul.f32 %v1916, 1.442695
  %v1926 = vpow.pop %v1925
  %v1927 = vmul.f32 %v1917, 1.442695
  %v1928 = vpow.pop %v1927
  %v1929 = vmul.f32 %v1918, 1.442695
  %v1930 = vpow.pop %v1929
  %v1931 = vmul.f32 %v1919, 1.442695
  %v1932 = vpow.pop %v1931
  %v1933 = vmul.f32 %v1920, 1.442695
  %v1934 = vpow.pop %v1933
  %v1935 = vmul.f32 %v1921, 1.442695
  %v1936 = vpow.pop %v1935
  %v1937 = vmul.f32 %v1922, 1.442695
  %v1938 = vpow.pop %v1937
  %1939 = vadd.xlane.f32.xlu0 %v1924
  %v1940 = vpop.xlane.xlu0 %1939
  %1941 = vadd.xlane.f32.xlu0 %v1926
  %v1942 = vpop.xlane.xlu0 %1941
  %1943 = vadd.xlane.f32.xlu0 %v1928
  %v1944 = vpop.xlane.xlu0 %1943
  %1945 = vadd.xlane.f32.xlu0 %v1930
  %v1946 = vpop.xlane.xlu0 %1945
  %1947 = vadd.xlane.f32.xlu0 %v1932
  %v1948 = vpop.xlane.xlu0 %1947
  %1949 = vadd.xlane.f32.xlu0 %v1934
  %v1950 = vpop.xlane.xlu0 %1949
  %1951 = vadd.xlane.f32.xlu0 %v1936
  %v1952 = vpop.xlane.xlu0 %1951
  %1953 = vadd.xlane.f32.xlu0 %v1938
  %v1954 = vpop.xlane.xlu0 %1953
  %v1955 = vlog2.pop %v1940
  %v1956 = vmul.f32 %v1955, 0.6931472
  %v1957 = vlog2.pop %v1942
  %v1958 = vmul.f32 %v1957, 0.6931472
  %v1959 = vlog2.pop %v1944
  %v1960 = vmul.f32 %v1959, 0.6931472
  %v1961 = vlog2.pop %v1946
  %v1962 = vmul.f32 %v1961, 0.6931472
  %v1963 = vlog2.pop %v1948
  %v1964 = vmul.f32 %v1963, 0.6931472
  %v1965 = vlog2.pop %v1950
  %v1966 = vmul.f32 %v1965, 0.6931472
  %v1967 = vlog2.pop %v1952
  %v1968 = vmul.f32 %v1967, 0.6931472
  %v1969 = vlog2.pop %v1954
  %v1970 = vmul.f32 %v1969, 0.6931472
  %v1971 = vadd.f32 %v1900, %v1956
  %v1972 = vadd.f32 %v1902, %v1958
  %v1973 = vadd.f32 %v1904, %v1960
  %v1974 = vadd.f32 %v1906, %v1962
  %v1975 = vadd.f32 %v1908, %v1964
  %v1976 = vadd.f32 %v1910, %v1966
  %v1977 = vadd.f32 %v1912, %v1968
  %v1978 = vadd.f32 %v1914, %v1970
  %v1979 = vsub.f32 %v1891, %v1971
  %v1980 = vsub.f32 %v1892, %v1972
  %v1981 = vsub.f32 %v1893, %v1973
  %v1982 = vsub.f32 %v1894, %v1974
  %v1983 = vsub.f32 %v1895, %v1975
  %v1984 = vsub.f32 %v1896, %v1976
  %v1985 = vsub.f32 %v1897, %v1977
  %v1986 = vsub.f32 %v1898, %v1978
  %1987 = vst [vmem:[%s10] sm:$0xff] %v1979
  %1988 = vst [vmem:[%s10 + $0x8] sm:$0xff] %v1980
  %1989 = vst [vmem:[%s10 + $0x10] sm:$0xff] %v1981
  %1990 = vst [vmem:[%s10 + $0x18] sm:$0xff] %v1982
  %1991 = vst [vmem:[%s10 + $0x20] sm:$0xff] %v1983
  %1992 = vst [vmem:[%s10 + $0x28] sm:$0xff] %v1984
  %1993 = vst [vmem:[%s10 + $0x30] sm:$0xff] %v1985
  %1994 = vst [vmem:[%s10 + $0x38] sm:$0xff] %v1986
  // Predicated region
  $region42: #{speech_to_text_forward.1} parent=0 // pred_check
    _
  $region43: #{speech_to_text_forward.1} parent=0 // pred_check_branch
    %1996 = sbr.rel (0) target = $region45
  $region44: #{speech_to_text_forward.1} parent=0 // pred_region
    _
  $region45: #{speech_to_text_forward.1} parent=0 // pred_fallthru
    _
  // Predicated region
  $region46: #{speech_to_text_forward.1} parent=0 // pred_check
    _
  $region47: #{speech_to_text_forward.1} parent=0 // pred_check_branch
    %1998 = sbr.rel (0) target = $region49
  $region48: #{speech_to_text_forward.1} parent=0 // pred_region
    _
  $region49: #{speech_to_text_forward.1} parent=0 // pred_fallthru
    _

</llo_original>
